<compile_context>
chip_gen: v6e
topology: v6e:2x2x1
jax: 0.10.0
libtpu: 0.0.40
codegen_flags: <defaults>
</compile_context>

<pallas_src>
import functools

import jax
import jax.numpy as jnp
from jax import lax
from jax.experimental import pallas as pl
from jax.experimental.pallas import tpu as pltpu


# --------------------------------------------------------------------------
# Kernel
# --------------------------------------------------------------------------
def _lstm_cls_argmax_kernel(x_ref, wih_ref, whh_ref, b_ref, wc_ref, bc_ref,
                            out_ref, xg_ref, hs_ref, *, seq_len, batch_tile):
    """One batch tile: batched LSTM recurrence -> Linear -> argmax.

    x_ref  : (1, S*Bt, D) bf16  time-major rows (row = s*Bt + b)
    wih_ref: (D, 4H)      bf16  input->gates weights (gate order i, f, g, o)
    whh_ref: (H, 4H)      bf16  hidden->gates weights
    b_ref  : (1, 4H)      f32   combined bias (b_ih + b_hh)
    wc_ref : (H, C)       bf16  classifier weight
    bc_ref : (1, C)       f32   classifier bias
    out_ref: (1, S*Bt, 1) int32 predicted class per (time, batch) row
    xg_ref : (S*Bt, 4H)   f32   scratch: input contribution to gates
    hs_ref : (S*Bt, H)    bf16  scratch: per-step hidden states
    """
    S, Bt = seq_len, batch_tile
    H = whh_ref.shape[0]
    C = wc_ref.shape[1]

    # Input projection for the whole tile: one (S*Bt, D) @ (D, 4H) MXU matmul
    # (bf16 in, f32 accumulate); combined bias folded in once.
    xg_ref[...] = jnp.dot(x_ref[0], wih_ref[...],
                          preferred_element_type=jnp.float32) + b_ref[...]

    whh = whh_ref[...]            # hoisted: loaded once, reused every timestep

    h0 = jnp.zeros((Bt, H), jnp.bfloat16)   # h only ever feeds the bf16 matmul
    c0 = jnp.zeros((Bt, H), jnp.float32)

    def step(t, carry):
        h, c = carry
        row = t * Bt
        if not isinstance(t, int) and Bt % 8 == 0:
            row = pl.multiple_of(row, 8)      # aligned sublane-offset hint
        g = xg_ref[pl.ds(row, Bt), :] + jnp.dot(
            h, whh, preferred_element_type=jnp.float32)           # (Bt,4H) f32
        # sigmoid(x) = 0.5*tanh(0.5*x) + 0.5 : one EUP pass for i/f/o gates
        # (the 0.5*x and +0.5 are VPU ops in free slots).  The g-gate tanh is
        # computed on its slice only.  Gate order i, f, g, o (torch.nn.LSTM).
        sg_t = jnp.tanh(0.5 * g)
        i_g = 0.5 * sg_t[:, 0 * H:1 * H] + 0.5
        f_g = 0.5 * sg_t[:, 1 * H:2 * H] + 0.5
        o_g = 0.5 * sg_t[:, 3 * H:4 * H] + 0.5
        g_g = jnp.tanh(g[:, 2 * H:3 * H])
        c_new = f_g * c + i_g * g_g
        h_new = (o_g * jnp.tanh(c_new)).astype(jnp.bfloat16)
        hs_ref[pl.ds(row, Bt), :] = h_new
        return (h_new, c_new)

    if S <= 32:
        # Full unroll at trace time (static slices, full LLO visibility).
        carry = (h0, c0)
        for t in range(S):
            carry = step(t, carry)
    else:
        # Modest unroll: large Bt already fills the VALU/EUP each step and a
        # long unroll only raises vreg pressure on the serial critical chain.
        lax.fori_loop(0, S, step, (h0, c0), unroll=2 if Bt >= 64 else 4)

    # Classifier + argmax over the class dim (first-max index, like
    # torch.argmax).  bf16 MXU matmul with f32 accumulation; bias add and the
    # tie-break comparison stay in f32.
    logits = jnp.dot(hs_ref[...], wc_ref[...],
                     preferred_element_type=jnp.float32) + bc_ref[...]
    maxv = jnp.max(logits, axis=-1, keepdims=True)
    idx = lax.broadcasted_iota(jnp.int32, logits.shape, dimension=1)
    cand = jnp.where(logits == maxv, idx, jnp.int32(C))
    # Clamp keeps the result a valid class index even for an all-NaN row.
    out_ref[0] = jnp.minimum(jnp.min(cand, axis=-1, keepdims=True),
                             jnp.int32(C - 1))


# --------------------------------------------------------------------------
# Tile-size / VMEM heuristics (generation-aware)
# --------------------------------------------------------------------------
def _vmem_capacity_bytes():
    try:
        return int(pltpu.get_tpu_info().vmem_capacity_bytes)
    except Exception:
        return 64 << 20        # conservative (v7x per-TensorCore VMEM)


def _is_multi_tensorcore_chip():
    try:
        kind = jax.devices()[0].device_kind.lower()
        return ("v7" in kind) or ("7x" in kind)
    except Exception:
        return False


def _tile_vmem_bytes(S, D, H, C, Bt):
    """Kernel VMEM footprint for one batch tile (double-buffered I/O + scratch)."""
    x_blk = 2 * S * Bt * D * 2          # bf16 activations, double-buffered
    xg = S * Bt * 4 * H * 4             # f32 gate-input scratch
    hs = S * Bt * H * 2                 # bf16 hidden-state scratch
    out = 2 * S * Bt * 4                # int32 predictions, double-buffered
    wgts = 2 * (D * 4 * H * 2 + H * 4 * H * 2 + H * C * 2) + 4 * (4 * H + C)
    return x_blk + xg + hs + out + wgts


def _pick_batch_tile(B, S, D, H, C, *, vreg_cap=64):
    """Largest batch tile dividing B that fits the vreg-pressure cap and a
    generation-aware VMEM budget; prefers >=2 grid steps on 2-TC chips."""
    budget = _vmem_capacity_bytes() // 2

    def fits(bt):
        return _tile_vmem_bytes(S, D, H, C, bt) <= budget

    divs = [bt for bt in range(1, min(B, vreg_cap) + 1)
            if B % bt == 0 and fits(bt)]
    if not divs:
        divs = [1]
    aligned = [bt for bt in divs if bt % 8 == 0]
    pool = aligned if aligned else divs
    if _is_multi_tensorcore_chip():
        multi = [bt for bt in pool if B // bt >= 2]   # shard across both TCs
        if multi:
            pool = multi
    return max(pool)


def _vmem_limit_for(S, D, H, C, Bt):
    phys = _vmem_capacity_bytes()
    need = _tile_vmem_bytes(S, D, H, C, Bt)
    limit = need + need // 4 + (2 << 20)              # 25% + 2 MiB headroom
    return int(min(max(limit, 16 << 20), phys - (4 << 20)))


# --------------------------------------------------------------------------
# pallas_call wrapper
# --------------------------------------------------------------------------
def lstm_classifier_argmax(x_tm, wih_bf, whh_bf, b, wc_bf, bc, *,
                           seq_len, batch_tile):
    """x_tm: (nb, S*Bt, D) bf16, rows time-major within each batch tile
    (row = s*Bt + b).  Returns (nb, S*Bt, 1) int32 predictions."""
    nb, rows, D = x_tm.shape
    S, Bt = seq_len, batch_tile
    assert rows == S * Bt, (rows, S, Bt)
    H = whh_bf.shape[0]
    C = wc_bf.shape[1]

    kernel = functools.partial(_lstm_cls_argmax_kernel,
                               seq_len=S, batch_tile=Bt)

    return pl.pallas_call(
        kernel,
        out_shape=jax.ShapeDtypeStruct((nb, S * Bt, 1), jnp.int32),
        grid_spec=pltpu.PrefetchScalarGridSpec(
            num_scalar_prefetch=0,
            grid=(nb,),
            in_specs=[
                pl.BlockSpec((1, S * Bt, D), lambda i: (i, 0, 0)),
                pl.BlockSpec((D, 4 * H), lambda i: (0, 0)),
                pl.BlockSpec((H, 4 * H), lambda i: (0, 0)),
                pl.BlockSpec((1, 4 * H), lambda i: (0, 0)),
                pl.BlockSpec((H, C), lambda i: (0, 0)),
                pl.BlockSpec((1, C), lambda i: (0, 0)),
            ],
            out_specs=pl.BlockSpec((1, S * Bt, 1), lambda i: (i, 0, 0)),
            scratch_shapes=[
                pltpu.VMEM((S * Bt, 4 * H), jnp.float32),   # xg: gate inputs
                pltpu.VMEM((S * Bt, H), jnp.bfloat16),      # hs: hidden states
            ],
        ),
        compiler_params=pltpu.CompilerParams(
            dimension_semantics=("parallel",),
            vmem_limit_bytes=_vmem_limit_for(S, D, H, C, Bt),
        ),
    )(x_tm, wih_bf, whh_bf, b, wc_bf, bc)


# --------------------------------------------------------------------------
# Model glue
# --------------------------------------------------------------------------
def init_params(key, vocab_size, bert_dim, lstm_hidden, class_num):
    ks = jax.random.split(key, 7)
    H = lstm_hidden
    s = 1.0 / jnp.sqrt(jnp.float32(H))
    params = {
        # synthetic stand-in for the frozen pretrained BERT encoder output
        "bert_embedding": 0.02 * jax.random.normal(
            ks[0], (vocab_size, bert_dim), jnp.float32),
        # LSTM (gate order i, f, g, o), stored pre-transposed (in, 4H)
        "wih": jax.random.uniform(ks[1], (bert_dim, 4 * H), jnp.float32, -s, s),
        "whh": jax.random.uniform(ks[2], (H, 4 * H), jnp.float32, -s, s),
        "b": (jax.random.uniform(ks[3], (1, 4 * H), jnp.float32, -s, s)
              + jax.random.uniform(ks[4], (1, 4 * H), jnp.float32, -s, s)),
        # classifier Linear(H, C), stored pre-transposed (H, C)
        "wc": jax.random.uniform(ks[5], (H, class_num), jnp.float32, -s, s),
        "bc": jax.random.uniform(ks[6], (1, class_num), jnp.float32, -s, s),
    }
    return params


def bert_lstm_ner_forward(params, batch_index):
    """Inference branch of Bert_LSTM_NerModel.forward (batch_label=None)."""
    B, S = batch_index.shape
    emb = params["bert_embedding"]
    D = emb.shape[1]
    H = params["whh"].shape[0]
    C = params["wc"].shape[1]

    Bt = _pick_batch_tile(B, S, D, H, C)
    assert B % Bt == 0, (B, Bt)
    nb = B // Bt

    # Permute the (tiny) index tensor instead of the activations: the "BERT"
    # gather then emits time-major bf16 tiles (row = s*Bt + b) directly, with
    # no extra HBM pass over the (B, S, 768) activations.
    idx_tm = batch_index.reshape(nb, Bt, S).transpose(0, 2, 1)    # (nb, S, Bt)
    x_tm = emb[idx_tm].astype(jnp.bfloat16).reshape(nb, S * Bt, D)

    out = lstm_classifier_argmax(
        x_tm,
        params["wih"].astype(jnp.bfloat16),
        params["whh"].astype(jnp.bfloat16),
        params["b"],
        params["wc"].astype(jnp.bfloat16),
        params["bc"],
        seq_len=S, batch_tile=Bt)

    # (nb, S*Bt, 1) time-major rows -> (B, S) batch-major labels (tiny int32).
    return out.reshape(nb, S, Bt).transpose(0, 2, 1).reshape(B, S)


if __name__ == "__main__":
    BATCH = 2
    SEQ = 8
    BERT_DIM = 768
    LSTM_HIDDEN = 32
    CLASS_NUM = 8
    VOCAB = 100

    key = jax.random.PRNGKey(0)
    k_params, k_idx = jax.random.split(key)
    params = init_params(k_params, VOCAB, BERT_DIM, LSTM_HIDDEN, CLASS_NUM)
    batch_index = jax.random.randint(k_idx, (BATCH, SEQ), 0, VOCAB, jnp.int32)

    forward = jax.jit(bert_lstm_ner_forward)
    preds = jax.block_until_ready(forward(params, batch_index))
    assert preds.shape == (BATCH, SEQ)
    assert preds.dtype == jnp.int32
    print("KERNEL_OK")
</pallas_src>

<mosaic_0001>
module attributes {stable_mosaic.version = 11 : i64} {
  func.func @_lstm_cls_argmax_kernel(%arg0: i32, %arg1: memref<1x16x768xbf16, #tpu.memory_space<vmem>>, %arg2: memref<768x128xbf16, #tpu.memory_space<vmem>>, %arg3: memref<32x128xbf16, #tpu.memory_space<vmem>>, %arg4: memref<1x128xf32, #tpu.memory_space<vmem>>, %arg5: memref<32x8xbf16, #tpu.memory_space<vmem>>, %arg6: memref<1x8xf32, #tpu.memory_space<vmem>>, %arg7: memref<1x16x1xi32, #tpu.memory_space<vmem>>, %arg8: memref<16x128xf32, #tpu.memory_space<vmem>>, %arg9: memref<16x32xbf16, #tpu.memory_space<vmem>>) attributes {dimension_semantics = [#tpu.dimension_semantics<parallel>], iteration_bounds = array<i64: 1>, scalar_prefetch = 0 : i64, scratch_operands = 2 : i64, tpu.core_type = #tpu.core_type<tc>, window_params = [{transform_indices = @transform_0, window_bounds = array<i64: 1, 16, 768>}, {pipeline_mode = #tpu.pipeline_mode<synchronous>, transform_indices = @transform_1, window_bounds = array<i64: 768, 128>}, {pipeline_mode = #tpu.pipeline_mode<synchronous>, transform_indices = @transform_2, window_bounds = array<i64: 32, 128>}, {pipeline_mode = #tpu.pipeline_mode<synchronous>, transform_indices = @transform_3, window_bounds = array<i64: 1, 128>}, {pipeline_mode = #tpu.pipeline_mode<synchronous>, transform_indices = @transform_4, window_bounds = array<i64: 32, 8>}, {pipeline_mode = #tpu.pipeline_mode<synchronous>, transform_indices = @transform_5, window_bounds = array<i64: 1, 8>}, {transform_indices = @transform_6, window_bounds = array<i64: 1, 16, 1>}]} {
    %c0 = arith.constant 0 : index
    %c0_0 = arith.constant 0 : index
    %c0_1 = arith.constant 0 : index
    %0 = vector.load %arg1[%c0, %c0_0, %c0_1] : memref<1x16x768xbf16, #tpu.memory_space<vmem>>, vector<1x16x768xbf16>
    %1 = vector.shape_cast %0 : vector<1x16x768xbf16> to vector<16x768xbf16>
    %c0_2 = arith.constant 0 : index
    %c0_3 = arith.constant 0 : index
    %2 = vector.load %arg2[%c0_2, %c0_3] : memref<768x128xbf16, #tpu.memory_space<vmem>>, vector<768x128xbf16>
    %cst = arith.constant dense<0.000000e+00> : vector<16x128xf32>
    %3 = tpu.matmul %1, %2, %cst {dimension_numbers = #tpu.dot_dimension_numbers<[1], [0], [0], [1], [0, 0, 1, 1], [], []>} : vector<16x768xbf16>, vector<768x128xbf16>, vector<16x128xf32> -> vector<16x128xf32>
    %c0_4 = arith.constant 0 : index
    %c0_5 = arith.constant 0 : index
    %4 = vector.load %arg4[%c0_4, %c0_5] : memref<1x128xf32, #tpu.memory_space<vmem>>, vector<1x128xf32>
    %5 = vector.broadcast %4 : vector<1x128xf32> to vector<16x128xf32>
    %6 = arith.addf %3, %5 : vector<16x128xf32>
    %c0_6 = arith.constant 0 : index
    %c0_7 = arith.constant 0 : index
    %7 = vector.load %arg8[%c0_6, %c0_7] : memref<16x128xf32, #tpu.memory_space<vmem>>, vector<16x128xf32>
    tpu.vector_store %arg8[%c0_6, %c0_7], %6 {strides = array<i32>} : memref<16x128xf32, #tpu.memory_space<vmem>>, vector<16x128xf32>,
    %c0_8 = arith.constant 0 : index
    %c0_9 = arith.constant 0 : index
    %8 = vector.load %arg3[%c0_8, %c0_9] : memref<32x128xbf16, #tpu.memory_space<vmem>>, vector<32x128xbf16>
    %cst_10 = arith.constant 0.000000e+00 : bf16
    %9 = vector.broadcast %cst_10 : bf16 to vector<2x32xbf16>
    %cst_11 = arith.constant 0.000000e+00 : f32
    %10 = vector.broadcast %cst_11 : f32 to vector<2x32xf32>
    %c0_12 = arith.constant 0 : index
    %c0_13 = arith.constant 0 : index
    %11 = vector.load %arg8[%c0_12, %c0_13] : memref<16x128xf32, #tpu.memory_space<vmem>>, vector<2x128xf32>
    %cst_14 = arith.constant dense<0.000000e+00> : vector<2x128xf32>
    %12 = tpu.matmul %9, %8, %cst_14 {dimension_numbers = #tpu.dot_dimension_numbers<[1], [0], [0], [1], [0, 0, 1, 1], [], []>} : vector<2x32xbf16>, vector<32x128xbf16>, vector<2x128xf32> -> vector<2x128xf32>
    %13 = arith.addf %11, %12 : vector<2x128xf32>
    %cst_15 = arith.constant 5.000000e-01 : f32
    %14 = vector.broadcast %cst_15 : f32 to vector<2x128xf32>
    %15 = arith.mulf %14, %13 : vector<2x128xf32>
    %16 = math.tanh %15 : vector<2x128xf32>
    %17 = vector.extract_strided_slice %16 {offsets = [0, 0], sizes = [2, 32], strides = [1, 1]} : vector<2x128xf32> to vector<2x32xf32>
    %cst_16 = arith.constant 5.000000e-01 : f32
    %18 = vector.broadcast %cst_16 : f32 to vector<2x32xf32>
    %19 = arith.mulf %18, %17 : vector<2x32xf32>
    %cst_17 = arith.constant 5.000000e-01 : f32
    %20 = vector.broadcast %cst_17 : f32 to vector<2x32xf32>
    %21 = arith.addf %19, %20 : vector<2x32xf32>
    %22 = vector.extract_strided_slice %16 {offsets = [0, 32], sizes = [2, 32], strides = [1, 1]} : vector<2x128xf32> to vector<2x32xf32>
    %cst_18 = arith.constant 5.000000e-01 : f32
    %23 = vector.broadcast %cst_18 : f32 to vector<2x32xf32>
    %24 = arith.mulf %23, %22 : vector<2x32xf32>
    %cst_19 = arith.constant 5.000000e-01 : f32
    %25 = vector.broadcast %cst_19 : f32 to vector<2x32xf32>
    %26 = arith.addf %24, %25 : vector<2x32xf32>
    %27 = vector.extract_strided_slice %16 {offsets = [0, 96], sizes = [2, 32], strides = [1, 1]} : vector<2x128xf32> to vector<2x32xf32>
    %cst_20 = arith.constant 5.000000e-01 : f32
    %28 = vector.broadcast %cst_20 : f32 to vector<2x32xf32>
    %29 = arith.mulf %28, %27 : vector<2x32xf32>
    %cst_21 = arith.constant 5.000000e-01 : f32
    %30 = vector.broadcast %cst_21 : f32 to vector<2x32xf32>
    %31 = arith.addf %29, %30 : vector<2x32xf32>
    %32 = vector.extract_strided_slice %13 {offsets = [0, 64], sizes = [2, 32], strides = [1, 1]} : vector<2x128xf32> to vector<2x32xf32>
    %33 = math.tanh %32 : vector<2x32xf32>
    %34 = arith.mulf %26, %10 : vector<2x32xf32>
    %35 = arith.mulf %21, %33 : vector<2x32xf32>
    %36 = arith.addf %34, %35 : vector<2x32xf32>
    %37 = math.tanh %36 : vector<2x32xf32>
    %38 = arith.mulf %31, %37 : vector<2x32xf32>
    %39 = arith.truncf %38 : vector<2x32xf32> to vector<2x32xbf16>
    %c0_22 = arith.constant 0 : index
    %c0_23 = arith.constant 0 : index
    %40 = vector.load %arg9[%c0_22, %c0_23] : memref<16x32xbf16, #tpu.memory_space<vmem>>, vector<2x32xbf16>
    tpu.vector_store %arg9[%c0_22, %c0_23], %39 {strides = array<i32>} : memref<16x32xbf16, #tpu.memory_space<vmem>>, vector<2x32xbf16>,
    %c2 = arith.constant 2 : index
    %c0_24 = arith.constant 0 : index
    %41 = vector.load %arg8[%c2, %c0_24] : memref<16x128xf32, #tpu.memory_space<vmem>>, vector<2x128xf32>
    %cst_25 = arith.constant dense<0.000000e+00> : vector<2x128xf32>
    %42 = tpu.matmul %39, %8, %cst_25 {dimension_numbers = #tpu.dot_dimension_numbers<[1], [0], [0], [1], [0, 0, 1, 1], [], []>} : vector<2x32xbf16>, vector<32x128xbf16>, vector<2x128xf32> -> vector<2x128xf32>
    %43 = arith.addf %41, %42 : vector<2x128xf32>
    %cst_26 = arith.constant 5.000000e-01 : f32
    %44 = vector.broadcast %cst_26 : f32 to vector<2x128xf32>
    %45 = arith.mulf %44, %43 : vector<2x128xf32>
    %46 = math.tanh %45 : vector<2x128xf32>
    %47 = vector.extract_strided_slice %46 {offsets = [0, 0], sizes = [2, 32], strides = [1, 1]} : vector<2x128xf32> to vector<2x32xf32>
    %cst_27 = arith.constant 5.000000e-01 : f32
    %48 = vector.broadcast %cst_27 : f32 to vector<2x32xf32>
    %49 = arith.mulf %48, %47 : vector<2x32xf32>
    %cst_28 = arith.constant 5.000000e-01 : f32
    %50 = vector.broadcast %cst_28 : f32 to vector<2x32xf32>
    %51 = arith.addf %49, %50 : vector<2x32xf32>
    %52 = vector.extract_strided_slice %46 {offsets = [0, 32], sizes = [2, 32], strides = [1, 1]} : vector<2x128xf32> to vector<2x32xf32>
    %cst_29 = arith.constant 5.000000e-01 : f32
    %53 = vector.broadcast %cst_29 : f32 to vector<2x32xf32>
    %54 = arith.mulf %53, %52 : vector<2x32xf32>
    %cst_30 = arith.constant 5.000000e-01 : f32
    %55 = vector.broadcast %cst_30 : f32 to vector<2x32xf32>
    %56 = arith.addf %54, %55 : vector<2x32xf32>
    %57 = vector.extract_strided_slice %46 {offsets = [0, 96], sizes = [2, 32], strides = [1, 1]} : vector<2x128xf32> to vector<2x32xf32>
    %cst_31 = arith.constant 5.000000e-01 : f32
    %58 = vector.broadcast %cst_31 : f32 to vector<2x32xf32>
    %59 = arith.mulf %58, %57 : vector<2x32xf32>
    %cst_32 = arith.constant 5.000000e-01 : f32
    %60 = vector.broadcast %cst_32 : f32 to vector<2x32xf32>
    %61 = arith.addf %59, %60 : vector<2x32xf32>
    %62 = vector.extract_strided_slice %43 {offsets = [0, 64], sizes = [2, 32], strides = [1, 1]} : vector<2x128xf32> to vector<2x32xf32>
    %63 = math.tanh %62 : vector<2x32xf32>
    %64 = arith.mulf %56, %36 : vector<2x32xf32>
    %65 = arith.mulf %51, %63 : vector<2x32xf32>
    %66 = arith.addf %64, %65 : vector<2x32xf32>
    %67 = math.tanh %66 : vector<2x32xf32>
    %68 = arith.mulf %61, %67 : vector<2x32xf32>
    %69 = arith.truncf %68 : vector<2x32xf32> to vector<2x32xbf16>
    %c2_33 = arith.constant 2 : index
    %c0_34 = arith.constant 0 : index
    %70 = vector.load %arg9[%c2_33, %c0_34] : memref<16x32xbf16, #tpu.memory_space<vmem>>, vector<2x32xbf16>
    tpu.vector_store %arg9[%c2_33, %c0_34], %69 {strides = array<i32>} : memref<16x32xbf16, #tpu.memory_space<vmem>>, vector<2x32xbf16>,
    %c4 = arith.constant 4 : index
    %c0_35 = arith.constant 0 : index
    %71 = vector.load %arg8[%c4, %c0_35] : memref<16x128xf32, #tpu.memory_space<vmem>>, vector<2x128xf32>
    %cst_36 = arith.constant dense<0.000000e+00> : vector<2x128xf32>
    %72 = tpu.matmul %69, %8, %cst_36 {dimension_numbers = #tpu.dot_dimension_numbers<[1], [0], [0], [1], [0, 0, 1, 1], [], []>} : vector<2x32xbf16>, vector<32x128xbf16>, vector<2x128xf32> -> vector<2x128xf32>
    %73 = arith.addf %71, %72 : vector<2x128xf32>
    %cst_37 = arith.constant 5.000000e-01 : f32
    %74 = vector.broadcast %cst_37 : f32 to vector<2x128xf32>
    %75 = arith.mulf %74, %73 : vector<2x128xf32>
    %76 = math.tanh %75 : vector<2x128xf32>
    %77 = vector.extract_strided_slice %76 {offsets = [0, 0], sizes = [2, 32], strides = [1, 1]} : vector<2x128xf32> to vector<2x32xf32>
    %cst_38 = arith.constant 5.000000e-01 : f32
    %78 = vector.broadcast %cst_38 : f32 to vector<2x32xf32>
    %79 = arith.mulf %78, %77 : vector<2x32xf32>
    %cst_39 = arith.constant 5.000000e-01 : f32
    %80 = vector.broadcast %cst_39 : f32 to vector<2x32xf32>
    %81 = arith.addf %79, %80 : vector<2x32xf32>
    %82 = vector.extract_strided_slice %76 {offsets = [0, 32], sizes = [2, 32], strides = [1, 1]} : vector<2x128xf32> to vector<2x32xf32>
    %cst_40 = arith.constant 5.000000e-01 : f32
    %83 = vector.broadcast %cst_40 : f32 to vector<2x32xf32>
    %84 = arith.mulf %83, %82 : vector<2x32xf32>
    %cst_41 = arith.constant 5.000000e-01 : f32
    %85 = vector.broadcast %cst_41 : f32 to vector<2x32xf32>
    %86 = arith.addf %84, %85 : vector<2x32xf32>
    %87 = vector.extract_strided_slice %76 {offsets = [0, 96], sizes = [2, 32], strides = [1, 1]} : vector<2x128xf32> to vector<2x32xf32>
    %cst_42 = arith.constant 5.000000e-01 : f32
    %88 = vector.broadcast %cst_42 : f32 to vector<2x32xf32>
    %89 = arith.mulf %88, %87 : vector<2x32xf32>
    %cst_43 = arith.constant 5.000000e-01 : f32
    %90 = vector.broadcast %cst_43 : f32 to vector<2x32xf32>
    %91 = arith.addf %89, %90 : vector<2x32xf32>
    %92 = vector.extract_strided_slice %73 {offsets = [0, 64], sizes = [2, 32], strides = [1, 1]} : vector<2x128xf32> to vector<2x32xf32>
    %93 = math.tanh %92 : vector<2x32xf32>
    %94 = arith.mulf %86, %66 : vector<2x32xf32>
    %95 = arith.mulf %81, %93 : vector<2x32xf32>
    %96 = arith.addf %94, %95 : vector<2x32xf32>
    %97 = math.tanh %96 : vector<2x32xf32>
    %98 = arith.mulf %91, %97 : vector<2x32xf32>
    %99 = arith.truncf %98 : vector<2x32xf32> to vector<2x32xbf16>
    %c4_44 = arith.constant 4 : index
    %c0_45 = arith.constant 0 : index
    %100 = vector.load %arg9[%c4_44, %c0_45] : memref<16x32xbf16, #tpu.memory_space<vmem>>, vector<2x32xbf16>
    tpu.vector_store %arg9[%c4_44, %c0_45], %99 {strides = array<i32>} : memref<16x32xbf16, #tpu.memory_space<vmem>>, vector<2x32xbf16>,
    %c6 = arith.constant 6 : index
    %c0_46 = arith.constant 0 : index
    %101 = vector.load %arg8[%c6, %c0_46] : memref<16x128xf32, #tpu.memory_space<vmem>>, vector<2x128xf32>
    %cst_47 = arith.constant dense<0.000000e+00> : vector<2x128xf32>
    %102 = tpu.matmul %99, %8, %cst_47 {dimension_numbers = #tpu.dot_dimension_numbers<[1], [0], [0], [1], [0, 0, 1, 1], [], []>} : vector<2x32xbf16>, vector<32x128xbf16>, vector<2x128xf32> -> vector<2x128xf32>
    %103 = arith.addf %101, %102 : vector<2x128xf32>
    %cst_48 = arith.constant 5.000000e-01 : f32
    %104 = vector.broadcast %cst_48 : f32 to vector<2x128xf32>
    %105 = arith.mulf %104, %103 : vector<2x128xf32>
    %106 = math.tanh %105 : vector<2x128xf32>
    %107 = vector.extract_strided_slice %106 {offsets = [0, 0], sizes = [2, 32], strides = [1, 1]} : vector<2x128xf32> to vector<2x32xf32>
    %cst_49 = arith.constant 5.000000e-01 : f32
    %108 = vector.broadcast %cst_49 : f32 to vector<2x32xf32>
    %109 = arith.mulf %108, %107 : vector<2x32xf32>
    %cst_50 = arith.constant 5.000000e-01 : f32
    %110 = vector.broadcast %cst_50 : f32 to vector<2x32xf32>
    %111 = arith.addf %109, %110 : vector<2x32xf32>
    %112 = vector.extract_strided_slice %106 {offsets = [0, 32], sizes = [2, 32], strides = [1, 1]} : vector<2x128xf32> to vector<2x32xf32>
    %cst_51 = arith.constant 5.000000e-01 : f32
    %113 = vector.broadcast %cst_51 : f32 to vector<2x32xf32>
    %114 = arith.mulf %113, %112 : vector<2x32xf32>
    %cst_52 = arith.constant 5.000000e-01 : f32
    %115 = vector.broadcast %cst_52 : f32 to vector<2x32xf32>
    %116 = arith.addf %114, %115 : vector<2x32xf32>
    %117 = vector.extract_strided_slice %106 {offsets = [0, 96], sizes = [2, 32], strides = [1, 1]} : vector<2x128xf32> to vector<2x32xf32>
    %cst_53 = arith.constant 5.000000e-01 : f32
    %118 = vector.broadcast %cst_53 : f32 to vector<2x32xf32>
    %119 = arith.mulf %118, %117 : vector<2x32xf32>
    %cst_54 = arith.constant 5.000000e-01 : f32
    %120 = vector.broadcast %cst_54 : f32 to vector<2x32xf32>
    %121 = arith.addf %119, %120 : vector<2x32xf32>
    %122 = vector.extract_strided_slice %103 {offsets = [0, 64], sizes = [2, 32], strides = [1, 1]} : vector<2x128xf32> to vector<2x32xf32>
    %123 = math.tanh %122 : vector<2x32xf32>
    %124 = arith.mulf %116, %96 : vector<2x32xf32>
    %125 = arith.mulf %111, %123 : vector<2x32xf32>
    %126 = arith.addf %124, %125 : vector<2x32xf32>
    %127 = math.tanh %126 : vector<2x32xf32>
    %128 = arith.mulf %121, %127 : vector<2x32xf32>
    %129 = arith.truncf %128 : vector<2x32xf32> to vector<2x32xbf16>
    %c6_55 = arith.constant 6 : index
    %c0_56 = arith.constant 0 : index
    %130 = vector.load %arg9[%c6_55, %c0_56] : memref<16x32xbf16, #tpu.memory_space<vmem>>, vector<2x32xbf16>
    tpu.vector_store %arg9[%c6_55, %c0_56], %129 {strides = array<i32>} : memref<16x32xbf16, #tpu.memory_space<vmem>>, vector<2x32xbf16>,
    %c8 = arith.constant 8 : index
    %c0_57 = arith.constant 0 : index
    %131 = vector.load %arg8[%c8, %c0_57] : memref<16x128xf32, #tpu.memory_space<vmem>>, vector<2x128xf32>
    %cst_58 = arith.constant dense<0.000000e+00> : vector<2x128xf32>
    %132 = tpu.matmul %129, %8, %cst_58 {dimension_numbers = #tpu.dot_dimension_numbers<[1], [0], [0], [1], [0, 0, 1, 1], [], []>} : vector<2x32xbf16>, vector<32x128xbf16>, vector<2x128xf32> -> vector<2x128xf32>
    %133 = arith.addf %131, %132 : vector<2x128xf32>
    %cst_59 = arith.constant 5.000000e-01 : f32
    %134 = vector.broadcast %cst_59 : f32 to vector<2x128xf32>
    %135 = arith.mulf %134, %133 : vector<2x128xf32>
    %136 = math.tanh %135 : vector<2x128xf32>
    %137 = vector.extract_strided_slice %136 {offsets = [0, 0], sizes = [2, 32], strides = [1, 1]} : vector<2x128xf32> to vector<2x32xf32>
    %cst_60 = arith.constant 5.000000e-01 : f32
    %138 = vector.broadcast %cst_60 : f32 to vector<2x32xf32>
    %139 = arith.mulf %138, %137 : vector<2x32xf32>
    %cst_61 = arith.constant 5.000000e-01 : f32
    %140 = vector.broadcast %cst_61 : f32 to vector<2x32xf32>
    %141 = arith.addf %139, %140 : vector<2x32xf32>
    %142 = vector.extract_strided_slice %136 {offsets = [0, 32], sizes = [2, 32], strides = [1, 1]} : vector<2x128xf32> to vector<2x32xf32>
    %cst_62 = arith.constant 5.000000e-01 : f32
    %143 = vector.broadcast %cst_62 : f32 to vector<2x32xf32>
    %144 = arith.mulf %143, %142 : vector<2x32xf32>
    %cst_63 = arith.constant 5.000000e-01 : f32
    %145 = vector.broadcast %cst_63 : f32 to vector<2x32xf32>
    %146 = arith.addf %144, %145 : vector<2x32xf32>
    %147 = vector.extract_strided_slice %136 {offsets = [0, 96], sizes = [2, 32], strides = [1, 1]} : vector<2x128xf32> to vector<2x32xf32>
    %cst_64 = arith.constant 5.000000e-01 : f32
    %148 = vector.broadcast %cst_64 : f32 to vector<2x32xf32>
    %149 = arith.mulf %148, %147 : vector<2x32xf32>
    %cst_65 = arith.constant 5.000000e-01 : f32
    %150 = vector.broadcast %cst_65 : f32 to vector<2x32xf32>
    %151 = arith.addf %149, %150 : vector<2x32xf32>
    %152 = vector.extract_strided_slice %133 {offsets = [0, 64], sizes = [2, 32], strides = [1, 1]} : vector<2x128xf32> to vector<2x32xf32>
    %153 = math.tanh %152 : vector<2x32xf32>
    %154 = arith.mulf %146, %126 : vector<2x32xf32>
    %155 = arith.mulf %141, %153 : vector<2x32xf32>
    %156 = arith.addf %154, %155 : vector<2x32xf32>
    %157 = math.tanh %156 : vector<2x32xf32>
    %158 = arith.mulf %151, %157 : vector<2x32xf32>
    %159 = arith.truncf %158 : vector<2x32xf32> to vector<2x32xbf16>
    %c8_66 = arith.constant 8 : index
    %c0_67 = arith.constant 0 : index
    %160 = vector.load %arg9[%c8_66, %c0_67] : memref<16x32xbf16, #tpu.memory_space<vmem>>, vector<2x32xbf16>
    tpu.vector_store %arg9[%c8_66, %c0_67], %159 {strides = array<i32>} : memref<16x32xbf16, #tpu.memory_space<vmem>>, vector<2x32xbf16>,
    %c10 = arith.constant 10 : index
    %c0_68 = arith.constant 0 : index
    %161 = vector.load %arg8[%c10, %c0_68] : memref<16x128xf32, #tpu.memory_space<vmem>>, vector<2x128xf32>
    %cst_69 = arith.constant dense<0.000000e+00> : vector<2x128xf32>
    %162 = tpu.matmul %159, %8, %cst_69 {dimension_numbers = #tpu.dot_dimension_numbers<[1], [0], [0], [1], [0, 0, 1, 1], [], []>} : vector<2x32xbf16>, vector<32x128xbf16>, vector<2x128xf32> -> vector<2x128xf32>
    %163 = arith.addf %161, %162 : vector<2x128xf32>
    %cst_70 = arith.constant 5.000000e-01 : f32
    %164 = vector.broadcast %cst_70 : f32 to vector<2x128xf32>
    %165 = arith.mulf %164, %163 : vector<2x128xf32>
    %166 = math.tanh %165 : vector<2x128xf32>
    %167 = vector.extract_strided_slice %166 {offsets = [0, 0], sizes = [2, 32], strides = [1, 1]} : vector<2x128xf32> to vector<2x32xf32>
    %cst_71 = arith.constant 5.000000e-01 : f32
    %168 = vector.broadcast %cst_71 : f32 to vector<2x32xf32>
    %169 = arith.mulf %168, %167 : vector<2x32xf32>
    %cst_72 = arith.constant 5.000000e-01 : f32
    %170 = vector.broadcast %cst_72 : f32 to vector<2x32xf32>
    %171 = arith.addf %169, %170 : vector<2x32xf32>
    %172 = vector.extract_strided_slice %166 {offsets = [0, 32], sizes = [2, 32], strides = [1, 1]} : vector<2x128xf32> to vector<2x32xf32>
    %cst_73 = arith.constant 5.000000e-01 : f32
    %173 = vector.broadcast %cst_73 : f32 to vector<2x32xf32>
    %174 = arith.mulf %173, %172 : vector<2x32xf32>
    %cst_74 = arith.constant 5.000000e-01 : f32
    %175 = vector.broadcast %cst_74 : f32 to vector<2x32xf32>
    %176 = arith.addf %174, %175 : vector<2x32xf32>
    %177 = vector.extract_strided_slice %166 {offsets = [0, 96], sizes = [2, 32], strides = [1, 1]} : vector<2x128xf32> to vector<2x32xf32>
    %cst_75 = arith.constant 5.000000e-01 : f32
    %178 = vector.broadcast %cst_75 : f32 to vector<2x32xf32>
    %179 = arith.mulf %178, %177 : vector<2x32xf32>
    %cst_76 = arith.constant 5.000000e-01 : f32
    %180 = vector.broadcast %cst_76 : f32 to vector<2x32xf32>
    %181 = arith.addf %179, %180 : vector<2x32xf32>
    %182 = vector.extract_strided_slice %163 {offsets = [0, 64], sizes = [2, 32], strides = [1, 1]} : vector<2x128xf32> to vector<2x32xf32>
    %183 = math.tanh %182 : vector<2x32xf32>
    %184 = arith.mulf %176, %156 : vector<2x32xf32>
    %185 = arith.mulf %171, %183 : vector<2x32xf32>
    %186 = arith.addf %184, %185 : vector<2x32xf32>
    %187 = math.tanh %186 : vector<2x32xf32>
    %188 = arith.mulf %181, %187 : vector<2x32xf32>
    %189 = arith.truncf %188 : vector<2x32xf32> to vector<2x32xbf16>
    %c10_77 = arith.constant 10 : index
    %c0_78 = arith.constant 0 : index
    %190 = vector.load %arg9[%c10_77, %c0_78] : memref<16x32xbf16, #tpu.memory_space<vmem>>, vector<2x32xbf16>
    tpu.vector_store %arg9[%c10_77, %c0_78], %189 {strides = array<i32>} : memref<16x32xbf16, #tpu.memory_space<vmem>>, vector<2x32xbf16>,
    %c12 = arith.constant 12 : index
    %c0_79 = arith.constant 0 : index
    %191 = vector.load %arg8[%c12, %c0_79] : memref<16x128xf32, #tpu.memory_space<vmem>>, vector<2x128xf32>
    %cst_80 = arith.constant dense<0.000000e+00> : vector<2x128xf32>
    %192 = tpu.matmul %189, %8, %cst_80 {dimension_numbers = #tpu.dot_dimension_numbers<[1], [0], [0], [1], [0, 0, 1, 1], [], []>} : vector<2x32xbf16>, vector<32x128xbf16>, vector<2x128xf32> -> vector<2x128xf32>
    %193 = arith.addf %191, %192 : vector<2x128xf32>
    %cst_81 = arith.constant 5.000000e-01 : f32
    %194 = vector.broadcast %cst_81 : f32 to vector<2x128xf32>
    %195 = arith.mulf %194, %193 : vector<2x128xf32>
    %196 = math.tanh %195 : vector<2x128xf32>
    %197 = vector.extract_strided_slice %196 {offsets = [0, 0], sizes = [2, 32], strides = [1, 1]} : vector<2x128xf32> to vector<2x32xf32>
    %cst_82 = arith.constant 5.000000e-01 : f32
    %198 = vector.broadcast %cst_82 : f32 to vector<2x32xf32>
    %199 = arith.mulf %198, %197 : vector<2x32xf32>
    %cst_83 = arith.constant 5.000000e-01 : f32
    %200 = vector.broadcast %cst_83 : f32 to vector<2x32xf32>
    %201 = arith.addf %199, %200 : vector<2x32xf32>
    %202 = vector.extract_strided_slice %196 {offsets = [0, 32], sizes = [2, 32], strides = [1, 1]} : vector<2x128xf32> to vector<2x32xf32>
    %cst_84 = arith.constant 5.000000e-01 : f32
    %203 = vector.broadcast %cst_84 : f32 to vector<2x32xf32>
    %204 = arith.mulf %203, %202 : vector<2x32xf32>
    %cst_85 = arith.constant 5.000000e-01 : f32
    %205 = vector.broadcast %cst_85 : f32 to vector<2x32xf32>
    %206 = arith.addf %204, %205 : vector<2x32xf32>
    %207 = vector.extract_strided_slice %196 {offsets = [0, 96], sizes = [2, 32], strides = [1, 1]} : vector<2x128xf32> to vector<2x32xf32>
    %cst_86 = arith.constant 5.000000e-01 : f32
    %208 = vector.broadcast %cst_86 : f32 to vector<2x32xf32>
    %209 = arith.mulf %208, %207 : vector<2x32xf32>
    %cst_87 = arith.constant 5.000000e-01 : f32
    %210 = vector.broadcast %cst_87 : f32 to vector<2x32xf32>
    %211 = arith.addf %209, %210 : vector<2x32xf32>
    %212 = vector.extract_strided_slice %193 {offsets = [0, 64], sizes = [2, 32], strides = [1, 1]} : vector<2x128xf32> to vector<2x32xf32>
    %213 = math.tanh %212 : vector<2x32xf32>
    %214 = arith.mulf %206, %186 : vector<2x32xf32>
    %215 = arith.mulf %201, %213 : vector<2x32xf32>
    %216 = arith.addf %214, %215 : vector<2x32xf32>
    %217 = math.tanh %216 : vector<2x32xf32>
    %218 = arith.mulf %211, %217 : vector<2x32xf32>
    %219 = arith.truncf %218 : vector<2x32xf32> to vector<2x32xbf16>
    %c12_88 = arith.constant 12 : index
    %c0_89 = arith.constant 0 : index
    %220 = vector.load %arg9[%c12_88, %c0_89] : memref<16x32xbf16, #tpu.memory_space<vmem>>, vector<2x32xbf16>
    tpu.vector_store %arg9[%c12_88, %c0_89], %219 {strides = array<i32>} : memref<16x32xbf16, #tpu.memory_space<vmem>>, vector<2x32xbf16>,
    %c14 = arith.constant 14 : index
    %c0_90 = arith.constant 0 : index
    %221 = vector.load %arg8[%c14, %c0_90] : memref<16x128xf32, #tpu.memory_space<vmem>>, vector<2x128xf32>
    %cst_91 = arith.constant dense<0.000000e+00> : vector<2x128xf32>
    %222 = tpu.matmul %219, %8, %cst_91 {dimension_numbers = #tpu.dot_dimension_numbers<[1], [0], [0], [1], [0, 0, 1, 1], [], []>} : vector<2x32xbf16>, vector<32x128xbf16>, vector<2x128xf32> -> vector<2x128xf32>
    %223 = arith.addf %221, %222 : vector<2x128xf32>
    %cst_92 = arith.constant 5.000000e-01 : f32
    %224 = vector.broadcast %cst_92 : f32 to vector<2x128xf32>
    %225 = arith.mulf %224, %223 : vector<2x128xf32>
    %226 = math.tanh %225 : vector<2x128xf32>
    %227 = vector.extract_strided_slice %226 {offsets = [0, 0], sizes = [2, 32], strides = [1, 1]} : vector<2x128xf32> to vector<2x32xf32>
    %cst_93 = arith.constant 5.000000e-01 : f32
    %228 = vector.broadcast %cst_93 : f32 to vector<2x32xf32>
    %229 = arith.mulf %228, %227 : vector<2x32xf32>
    %cst_94 = arith.constant 5.000000e-01 : f32
    %230 = vector.broadcast %cst_94 : f32 to vector<2x32xf32>
    %231 = arith.addf %229, %230 : vector<2x32xf32>
    %232 = vector.extract_strided_slice %226 {offsets = [0, 32], sizes = [2, 32], strides = [1, 1]} : vector<2x128xf32> to vector<2x32xf32>
    %cst_95 = arith.constant 5.000000e-01 : f32
    %233 = vector.broadcast %cst_95 : f32 to vector<2x32xf32>
    %234 = arith.mulf %233, %232 : vector<2x32xf32>
    %cst_96 = arith.constant 5.000000e-01 : f32
    %235 = vector.broadcast %cst_96 : f32 to vector<2x32xf32>
    %236 = arith.addf %234, %235 : vector<2x32xf32>
    %237 = vector.extract_strided_slice %226 {offsets = [0, 96], sizes = [2, 32], strides = [1, 1]} : vector<2x128xf32> to vector<2x32xf32>
    %cst_97 = arith.constant 5.000000e-01 : f32
    %238 = vector.broadcast %cst_97 : f32 to vector<2x32xf32>
    %239 = arith.mulf %238, %237 : vector<2x32xf32>
    %cst_98 = arith.constant 5.000000e-01 : f32
    %240 = vector.broadcast %cst_98 : f32 to vector<2x32xf32>
    %241 = arith.addf %239, %240 : vector<2x32xf32>
    %242 = vector.extract_strided_slice %223 {offsets = [0, 64], sizes = [2, 32], strides = [1, 1]} : vector<2x128xf32> to vector<2x32xf32>
    %243 = math.tanh %242 : vector<2x32xf32>
    %244 = arith.mulf %236, %216 : vector<2x32xf32>
    %245 = arith.mulf %231, %243 : vector<2x32xf32>
    %246 = arith.addf %244, %245 : vector<2x32xf32>
    %247 = math.tanh %246 : vector<2x32xf32>
    %248 = arith.mulf %241, %247 : vector<2x32xf32>
    %249 = arith.truncf %248 : vector<2x32xf32> to vector<2x32xbf16>
    %c14_99 = arith.constant 14 : index
    %c0_100 = arith.constant 0 : index
    %250 = vector.load %arg9[%c14_99, %c0_100] : memref<16x32xbf16, #tpu.memory_space<vmem>>, vector<2x32xbf16>
    tpu.vector_store %arg9[%c14_99, %c0_100], %249 {strides = array<i32>} : memref<16x32xbf16, #tpu.memory_space<vmem>>, vector<2x32xbf16>,
    %c0_101 = arith.constant 0 : index
    %c0_102 = arith.constant 0 : index
    %251 = vector.load %arg9[%c0_101, %c0_102] : memref<16x32xbf16, #tpu.memory_space<vmem>>, vector<16x32xbf16>
    %c0_103 = arith.constant 0 : index
    %c0_104 = arith.constant 0 : index
    %252 = vector.load %arg5[%c0_103, %c0_104] : memref<32x8xbf16, #tpu.memory_space<vmem>>, vector<32x8xbf16>
    %cst_105 = arith.constant dense<0.000000e+00> : vector<16x8xf32>
    %253 = tpu.matmul %251, %252, %cst_105 {dimension_numbers = #tpu.dot_dimension_numbers<[1], [0], [0], [1], [0, 0, 1, 1], [], []>} : vector<16x32xbf16>, vector<32x8xbf16>, vector<16x8xf32> -> vector<16x8xf32>
    %c0_106 = arith.constant 0 : index
    %c0_107 = arith.constant 0 : index
    %254 = vector.load %arg6[%c0_106, %c0_107] : memref<1x8xf32, #tpu.memory_space<vmem>>, vector<1x8xf32>
    %255 = vector.broadcast %254 : vector<1x8xf32> to vector<16x8xf32>
    %256 = arith.addf %253, %255 : vector<16x8xf32>
    %cst_108 = arith.constant dense<0xFF800000> : vector<16xf32>
    %257 = vector.multi_reduction <maximumf>, %256, %cst_108 [1] : vector<16x8xf32> to vector<16xf32>
    %258 = vector.shape_cast %257 : vector<16xf32> to vector<16x1xf32>
    %259 = tpu.iota {dimensions = array<i32: 1>} : vector<16x8xi32>
    %260 = vector.broadcast %258 : vector<16x1xf32> to vector<16x8xf32>
    %261 = arith.cmpf oeq, %256, %260 : vector<16x8xf32>
    %c8_i32 = arith.constant 8 : i32
    %262 = vector.broadcast %c8_i32 : i32 to vector<16x8xi32>
    %263 = arith.select %261, %259, %262 : vector<16x8xi1>, vector<16x8xi32>
    %cst_109 = arith.constant dense<2147483647> : vector<16xi32>
    %264 = vector.multi_reduction <minsi>, %263, %cst_109 [1] : vector<16x8xi32> to vector<16xi32>
    %265 = vector.shape_cast %264 : vector<16xi32> to vector<16x1xi32>
    %c7_i32 = arith.constant 7 : i32
    %266 = vector.broadcast %c7_i32 : i32 to vector<16x1xi32>
    %267 = arith.minsi %265, %266 : vector<16x1xi32>
    %c0_110 = arith.constant 0 : index
    %c0_111 = arith.constant 0 : index
    %c0_112 = arith.constant 0 : index
    %268 = vector.load %arg7[%c0_110, %c0_111, %c0_112] : memref<1x16x1xi32, #tpu.memory_space<vmem>>, vector<1x16x1xi32>
    %269 = vector.shape_cast %268 : vector<1x16x1xi32> to vector<16x1xi32>
    %270 = vector.shape_cast %267 : vector<16x1xi32> to vector<1x16x1xi32>
    tpu.vector_store %arg7[%c0_110, %c0_111, %c0_112], %270 {strides = array<i32>} : memref<1x16x1xi32, #tpu.memory_space<vmem>>, vector<1x16x1xi32>,
    return
  }
  func.func @transform_0(%arg0: i32) -> (i32, i32, i32) {
    %c0_i32 = arith.constant 0 : i32
    %c0_i32_0 = arith.constant 0 : i32
    %c0_i32_1 = arith.constant 0 : i32
    return %arg0, %c0_i32, %c0_i32_0 : i32, i32, i32
  }
  func.func @transform_1(%arg0: i32) -> (i32, i32) {
    %c0_i32 = arith.constant 0 : i32
    %c0_i32_0 = arith.constant 0 : i32
    %c0_i32_1 = arith.constant 0 : i32
    return %c0_i32, %c0_i32_0 : i32, i32
  }
  func.func @transform_2(%arg0: i32) -> (i32, i32) {
    %c0_i32 = arith.constant 0 : i32
    %c0_i32_0 = arith.constant 0 : i32
    %c0_i32_1 = arith.constant 0 : i32
    return %c0_i32, %c0_i32_0 : i32, i32
  }
  func.func @transform_3(%arg0: i32) -> (i32, i32) {
    %c0_i32 = arith.constant 0 : i32
    %c0_i32_0 = arith.constant 0 : i32
    %c0_i32_1 = arith.constant 0 : i32
    return %c0_i32, %c0_i32_0 : i32, i32
  }
  func.func @transform_4(%arg0: i32) -> (i32, i32) {
    %c0_i32 = arith.constant 0 : i32
    %c0_i32_0 = arith.constant 0 : i32
    %c0_i32_1 = arith.constant 0 : i32
    return %c0_i32, %c0_i32_0 : i32, i32
  }
  func.func @transform_5(%arg0: i32) -> (i32, i32) {
    %c0_i32 = arith.constant 0 : i32
    %c0_i32_0 = arith.constant 0 : i32
    %c0_i32_1 = arith.constant 0 : i32
    return %c0_i32, %c0_i32_0 : i32, i32
  }
  func.func @transform_6(%arg0: i32) -> (i32, i32, i32) {
    %c0_i32 = arith.constant 0 : i32
    %c0_i32_0 = arith.constant 0 : i32
    %c0_i32_1 = arith.constant 0 : i32
    return %arg0, %c0_i32, %c0_i32_0 : i32, i32, i32
  }
}

</mosaic_0001>

<llo_original>
// kernel: bert_lstm_ner_forward.1
$region0: #{bert_lstm_ner_forward.1}
  #allocation0 [shape = 'u32[]', space=smem, size = 0x4, offset = 0x4, fixed_abs, tag = 'smem constant byte address 0x4 - core index']
  #allocation1 [shape = 'u32[144,128]{1,0:T(1,128)}', space=vmem, size = 0x12000, scoped, tag = 'internal scratch']
  #allocation2 [shape = 'f32[16,128]{1,0:T(8,128)}', space=vmem, size = 0x2000, scoped, tag = 'scratch operand']
  #allocation3 [shape = 'bf16[16,32]{1,0:T(8,128)(2,1)}', space=vmem, size = 0x1000, scoped, tag = 'scratch operand']
  %s0 = inlined_call_operand.vmem [shape: bf16[1,16,768], index: 0, kind: input, shape index: {}]
  %s1 = inlined_call_operand.vmem [shape: bf16[768,128], index: 1, kind: input, shape index: {}]
  %s2 = inlined_call_operand.vmem [shape: bf16[32,128], index: 2, kind: input, shape index: {}]
  %s3 = inlined_call_operand.vmem [shape: f32[1,128], index: 3, kind: input, shape index: {}]
  %s4 = inlined_call_operand.vmem [shape: bf16[32,8], index: 4, kind: input, shape index: {}]
  %s5 = inlined_call_operand.vmem [shape: f32[1,8], index: 5, kind: input, shape index: {}]
  %s6 = inlined_call_operand.vmem [shape: s32[1,16,1], index: 6, kind: output, shape index: {}]
  %s7 = sld [smem:[#allocation0]]
  $region34: #{bert_lstm_ner_forward.1} parent=0
    _
  %s9 = ssub.s32 1, %s7
  %s10 = scalar_select 0, %s9, %s7
  // Predicated region
  $region2: #{bert_lstm_ner_forward.1} parent=0 // pred_check
    _
  $region3: #{bert_lstm_ner_forward.1} parent=0 // pred_check_branch
    %12 = sbr.rel (0) target = $region5
  $region4: #{bert_lstm_ner_forward.1} parent=0 // pred_region
    _
  $region5: #{bert_lstm_ner_forward.1} parent=0 // pred_fallthru
    _
  // Predicated region
  $region6: #{bert_lstm_ner_forward.1} parent=0 // pred_check
    _
  $region7: #{bert_lstm_ner_forward.1} parent=0 // pred_check_branch
    %14 = sbr.rel (0) target = $region9
  $region8: #{bert_lstm_ner_forward.1} parent=0 // pred_region
    _
  $region9: #{bert_lstm_ner_forward.1} parent=0 // pred_fallthru
    _
  // Predicated region
  $region10: #{bert_lstm_ner_forward.1} parent=0 // pred_check
    _
  $region11: #{bert_lstm_ner_forward.1} parent=0 // pred_check_branch
    %16 = sbr.rel (0) target = $region13
  $region12: #{bert_lstm_ner_forward.1} parent=0 // pred_region
    _
  $region13: #{bert_lstm_ner_forward.1} parent=0 // pred_fallthru
    _
  // Predicated region
  $region14: #{bert_lstm_ner_forward.1} parent=0 // pred_check
    _
  $region15: #{bert_lstm_ner_forward.1} parent=0 // pred_check_branch
    %18 = sbr.rel (0) target = $region17
  $region16: #{bert_lstm_ner_forward.1} parent=0 // pred_region
    _
  $region17: #{bert_lstm_ner_forward.1} parent=0 // pred_fallthru
    _
  // Predicated region
  $region18: #{bert_lstm_ner_forward.1} parent=0 // pred_check
    _
  $region19: #{bert_lstm_ner_forward.1} parent=0 // pred_check_branch
    %20 = sbr.rel (0) target = $region21
  $region20: #{bert_lstm_ner_forward.1} parent=0 // pred_region
    _
  $region21: #{bert_lstm_ner_forward.1} parent=0 // pred_fallthru
    _
  // Predicated region
  $region22: #{bert_lstm_ner_forward.1} parent=0 // pred_check
    _
  $region23: #{bert_lstm_ner_forward.1} parent=0 // pred_check_branch
    %22 = sbr.rel (0) target = $region25
  $region24: #{bert_lstm_ner_forward.1} parent=0 // pred_region
    _
  $region25: #{bert_lstm_ner_forward.1} parent=0 // pred_fallthru
    _
  %v24 = vld [vmem:[%s0] sm:$0xff]
  %v25 = vld [vmem:[%s0 + $0x8] sm:$0xff]
  %v26 = vld [vmem:[%s0 + $0x10] sm:$0xff]
  %v27 = vld [vmem:[%s0 + $0x18] sm:$0xff]
  %v28 = vld [vmem:[%s0 + $0x20] sm:$0xff]
  %v29 = vld [vmem:[%s0 + $0x28] sm:$0xff]
  %v30 = vld [vmem:[%s1] sm:$0xf]
  %v31 = vld [vmem:[%s1 + $0x4] sm:$0xf]
  %v32 = vld [vmem:[%s1 + $0x8] sm:$0xf]
  %v33 = vld [vmem:[%s1 + $0xc] sm:$0xf]
  %v34 = vld [vmem:[%s1 + $0x10] sm:$0xf]
  %v35 = vld [vmem:[%s1 + $0x14] sm:$0xf]
  %v36 = vld [vmem:[%s1 + $0x18] sm:$0xf]
  %v37 = vld [vmem:[%s1 + $0x1c] sm:$0xf]
  %v38 = vld [vmem:[%s1 + $0x20] sm:$0xf]
  %v39 = vld [vmem:[%s1 + $0x24] sm:$0xf]
  %v40 = vld [vmem:[%s1 + $0x28] sm:$0xf]
  %v41 = vld [vmem:[%s1 + $0x2c] sm:$0xf]
  %v42 = vld [vmem:[%s1 + $0x30] sm:$0xf]
  %v43 = vld [vmem:[%s1 + $0x34] sm:$0xf]
  %v44 = vld [vmem:[%s1 + $0x38] sm:$0xf]
  %v45 = vld [vmem:[%s1 + $0x3c] sm:$0xf]
  %v46 = vld [vmem:[%s1 + $0x40] sm:$0xf]
  %v47 = vld [vmem:[%s1 + $0x44] sm:$0xf]
  %v48 = vld [vmem:[%s1 + $0x48] sm:$0xf]
  %v49 = vld [vmem:[%s1 + $0x4c] sm:$0xf]
  %v50 = vld [vmem:[%s1 + $0x50] sm:$0xf]
  %v51 = vld [vmem:[%s1 + $0x54] sm:$0xf]
  %v52 = vld [vmem:[%s1 + $0x58] sm:$0xf]
  %v53 = vld [vmem:[%s1 + $0x5c] sm:$0xf]
  %v54 = vld [vmem:[%s1 + $0x60] sm:$0xf]
  %v55 = vld [vmem:[%s1 + $0x64] sm:$0xf]
  %v56 = vld [vmem:[%s1 + $0x68] sm:$0xf]
  %v57 = vld [vmem:[%s1 + $0x6c] sm:$0xf]
  %v58 = vld [vmem:[%s1 + $0x70] sm:$0xf]
  %v59 = vld [vmem:[%s1 + $0x74] sm:$0xf]
  %v60 = vld [vmem:[%s1 + $0x78] sm:$0xf]
  %v61 = vld [vmem:[%s1 + $0x7c] sm:$0xf]
  %v62 = vld [vmem:[%s1 + $0x80] sm:$0xf]
  %v63 = vld [vmem:[%s1 + $0x84] sm:$0xf]
  %v64 = vld [vmem:[%s1 + $0x88] sm:$0xf]
  %v65 = vld [vmem:[%s1 + $0x8c] sm:$0xf]
  %v66 = vld [vmem:[%s1 + $0x90] sm:$0xf]
  %v67 = vld [vmem:[%s1 + $0x94] sm:$0xf]
  %v68 = vld [vmem:[%s1 + $0x98] sm:$0xf]
  %v69 = vld [vmem:[%s1 + $0x9c] sm:$0xf]
  %v70 = vld [vmem:[%s1 + $0xa0] sm:$0xf]
  %v71 = vld [vmem:[%s1 + $0xa4] sm:$0xf]
  %v72 = vld [vmem:[%s1 + $0xa8] sm:$0xf]
  %v73 = vld [vmem:[%s1 + $0xac] sm:$0xf]
  %v74 = vld [vmem:[%s1 + $0xb0] sm:$0xf]
  %v75 = vld [vmem:[%s1 + $0xb4] sm:$0xf]
  %v76 = vld [vmem:[%s1 + $0xb8] sm:$0xf]
  %v77 = vld [vmem:[%s1 + $0xbc] sm:$0xf]
  %v78 = vld [vmem:[%s1 + $0xc0] sm:$0xf]
  %v79 = vld [vmem:[%s1 + $0xc4] sm:$0xf]
  %v80 = vld [vmem:[%s1 + $0xc8] sm:$0xf]
  %v81 = vld [vmem:[%s1 + $0xcc] sm:$0xf]
  %v82 = vld [vmem:[%s1 + $0xd0] sm:$0xf]
  %v83 = vld [vmem:[%s1 + $0xd4] sm:$0xf]
  %v84 = vld [vmem:[%s1 + $0xd8] sm:$0xf]
  %v85 = vld [vmem:[%s1 + $0xdc] sm:$0xf]
  %v86 = vld [vmem:[%s1 + $0xe0] sm:$0xf]
  %v87 = vld [vmem:[%s1 + $0xe4] sm:$0xf]
  %v88 = vld [vmem:[%s1 + $0xe8] sm:$0xf]
  %v89 = vld [vmem:[%s1 + $0xec] sm:$0xf]
  %v90 = vld [vmem:[%s1 + $0xf0] sm:$0xf]
  %v91 = vld [vmem:[%s1 + $0xf4] sm:$0xf]
  %v92 = vld [vmem:[%s1 + $0xf8] sm:$0xf]
  %v93 = vld [vmem:[%s1 + $0xfc] sm:$0xf]
  %v94 = vld [vmem:[%s1 + $0x100] sm:$0xf]
  %v95 = vld [vmem:[%s1 + $0x104] sm:$0xf]
  %v96 = vld [vmem:[%s1 + $0x108] sm:$0xf]
  %v97 = vld [vmem:[%s1 + $0x10c] sm:$0xf]
  %v98 = vld [vmem:[%s1 + $0x110] sm:$0xf]
  %v99 = vld [vmem:[%s1 + $0x114] sm:$0xf]
  %v100 = vld [vmem:[%s1 + $0x118] sm:$0xf]
  %v101 = vld [vmem:[%s1 + $0x11c] sm:$0xf]
  %v102 = vld [vmem:[%s1 + $0x120] sm:$0xf]
  %v103 = vld [vmem:[%s1 + $0x124] sm:$0xf]
  %v104 = vld [vmem:[%s1 + $0x128] sm:$0xf]
  %v105 = vld [vmem:[%s1 + $0x12c] sm:$0xf]
  %v106 = vld [vmem:[%s1 + $0x130] sm:$0xf]
  %v107 = vld [vmem:[%s1 + $0x134] sm:$0xf]
  %v108 = vld [vmem:[%s1 + $0x138] sm:$0xf]
  %v109 = vld [vmem:[%s1 + $0x13c] sm:$0xf]
  %v110 = vld [vmem:[%s1 + $0x140] sm:$0xf]
  %v111 = vld [vmem:[%s1 + $0x144] sm:$0xf]
  %v112 = vld [vmem:[%s1 + $0x148] sm:$0xf]
  %v113 = vld [vmem:[%s1 + $0x14c] sm:$0xf]
  %v114 = vld [vmem:[%s1 + $0x150] sm:$0xf]
  %v115 = vld [vmem:[%s1 + $0x154] sm:$0xf]
  %v116 = vld [vmem:[%s1 + $0x158] sm:$0xf]
  %v117 = vld [vmem:[%s1 + $0x15c] sm:$0xf]
  %v118 = vld [vmem:[%s1 + $0x160] sm:$0xf]
  %v119 = vld [vmem:[%s1 + $0x164] sm:$0xf]
  %v120 = vld [vmem:[%s1 + $0x168] sm:$0xf]
  %v121 = vld [vmem:[%s1 + $0x16c] sm:$0xf]
  %v122 = vld [vmem:[%s1 + $0x170] sm:$0xf]
  %v123 = vld [vmem:[%s1 + $0x174] sm:$0xf]
  %v124 = vld [vmem:[%s1 + $0x178] sm:$0xf]
  %v125 = vld [vmem:[%s1 + $0x17c] sm:$0xf]
  %v126 = vld [vmem:[%s3] sm:$0x1]
  %v128 = vlaneseq
  %v129 = vshrl.u32 %v128, 7
  %v130 = vsub.s32 0, %v129
  %v131 = vrot.slane %v126, %v130
  %v139 = vunpack.c.l.b16 %v24
  %v140 = vunpack.c.h.b16 %v24
  %v141 = vunpack.c.l.b16 %v25
  %v142 = vunpack.c.h.b16 %v25
  %v143 = vunpack.c.l.b16 %v26
  %v144 = vunpack.c.h.b16 %v26
  %v145 = vunpack.c.l.b16 %v27
  %v146 = vunpack.c.h.b16 %v27
  %v147 = vunpack.c.l.b16 %v28
  %v148 = vunpack.c.h.b16 %v28
  %v149 = vunpack.c.l.b16 %v29
  %v150 = vunpack.c.h.b16 %v29
  %v151 = vpack.c.b16 %v145, %v139
  %v152 = vpack.c.b16 %v146, %v140
  %v153 = vpack.c.b16 %v147, %v141
  %v154 = vpack.c.b16 %v148, %v142
  %v155 = vpack.c.b16 %v149, %v143
  %v156 = vpack.c.b16 %v150, %v144
  %v259 = vunpack.c.l.b16 %v30
  %v260 = vunpack.c.l.b16 %v31
  %v261 = vunpack.c.l.b16 %v32
  %v262 = vunpack.c.l.b16 %v33
  %v263 = vunpack.c.l.b16 %v34
  %v264 = vunpack.c.l.b16 %v35
  %v265 = vunpack.c.l.b16 %v36
  %v266 = vunpack.c.l.b16 %v37
  %v267 = vunpack.c.l.b16 %v38
  %v268 = vunpack.c.l.b16 %v39
  %v269 = vunpack.c.l.b16 %v40
  %v270 = vunpack.c.l.b16 %v41
  %v271 = vunpack.c.l.b16 %v42
  %v272 = vunpack.c.l.b16 %v43
  %v273 = vunpack.c.l.b16 %v44
  %v274 = vunpack.c.l.b16 %v45
  %v275 = vunpack.c.l.b16 %v46
  %v276 = vunpack.c.l.b16 %v47
  %v277 = vunpack.c.l.b16 %v48
  %v278 = vunpack.c.l.b16 %v49
  %v279 = vunpack.c.l.b16 %v50
  %v280 = vunpack.c.l.b16 %v51
  %v281 = vunpack.c.l.b16 %v52
  %v282 = vunpack.c.l.b16 %v53
  %v283 = vunpack.c.l.b16 %v54
  %v284 = vunpack.c.l.b16 %v55
  %v285 = vunpack.c.l.b16 %v56
  %v286 = vunpack.c.l.b16 %v57
  %v287 = vunpack.c.l.b16 %v58
  %v288 = vunpack.c.l.b16 %v59
  %v289 = vunpack.c.l.b16 %v60
  %v290 = vunpack.c.l.b16 %v61
  %v291 = vunpack.c.l.b16 %v62
  %v292 = vunpack.c.l.b16 %v63
  %v293 = vunpack.c.l.b16 %v64
  %v294 = vunpack.c.l.b16 %v65
  %v295 = vunpack.c.l.b16 %v66
  %v296 = vunpack.c.l.b16 %v67
  %v297 = vunpack.c.l.b16 %v68
  %v298 = vunpack.c.l.b16 %v69
  %v299 = vunpack.c.l.b16 %v70
  %v300 = vunpack.c.l.b16 %v71
  %v301 = vunpack.c.l.b16 %v72
  %v302 = vunpack.c.l.b16 %v73
  %v303 = vunpack.c.l.b16 %v74
  %v304 = vunpack.c.l.b16 %v75
  %v305 = vunpack.c.l.b16 %v76
  %v306 = vunpack.c.l.b16 %v77
  %v307 = vunpack.c.l.b16 %v78
  %v308 = vunpack.c.l.b16 %v79
  %v309 = vunpack.c.l.b16 %v80
  %v310 = vunpack.c.l.b16 %v81
  %v311 = vunpack.c.l.b16 %v82
  %v312 = vunpack.c.l.b16 %v83
  %v313 = vunpack.c.l.b16 %v84
  %v314 = vunpack.c.l.b16 %v85
  %v315 = vunpack.c.l.b16 %v86
  %v316 = vunpack.c.l.b16 %v87
  %v317 = vunpack.c.l.b16 %v88
  %v318 = vunpack.c.l.b16 %v89
  %v319 = vunpack.c.l.b16 %v90
  %v320 = vunpack.c.l.b16 %v91
  %v321 = vunpack.c.l.b16 %v92
  %v322 = vunpack.c.l.b16 %v93
  %v323 = vunpack.c.l.b16 %v94
  %v324 = vunpack.c.l.b16 %v95
  %v325 = vunpack.c.l.b16 %v96
  %v326 = vunpack.c.l.b16 %v97
  %v327 = vunpack.c.l.b16 %v98
  %v328 = vunpack.c.l.b16 %v99
  %v329 = vunpack.c.l.b16 %v100
  %v330 = vunpack.c.l.b16 %v101
  %v331 = vunpack.c.l.b16 %v102
  %v332 = vunpack.c.l.b16 %v103
  %v333 = vunpack.c.l.b16 %v104
  %v334 = vunpack.c.l.b16 %v105
  %v335 = vunpack.c.l.b16 %v106
  %v336 = vunpack.c.l.b16 %v107
  %v337 = vunpack.c.l.b16 %v108
  %v338 = vunpack.c.l.b16 %v109
  %v339 = vunpack.c.l.b16 %v110
  %v340 = vunpack.c.l.b16 %v111
  %v341 = vunpack.c.l.b16 %v112
  %v342 = vunpack.c.l.b16 %v113
  %v343 = vunpack.c.l.b16 %v114
  %v344 = vunpack.c.l.b16 %v115
  %v345 = vunpack.c.l.b16 %v116
  %v346 = vunpack.c.l.b16 %v117
  %v347 = vunpack.c.l.b16 %v118
  %v348 = vunpack.c.l.b16 %v119
  %v349 = vunpack.c.l.b16 %v120
  %v350 = vunpack.c.l.b16 %v121
  %v351 = vunpack.c.l.b16 %v122
  %v352 = vunpack.c.l.b16 %v123
  %v353 = vunpack.c.l.b16 %v124
  %v354 = vunpack.c.l.b16 %v125
  %v355 = vpack.c.b16 %v260, %v259
  %v356 = vpack.c.b16 %v262, %v261
  %v357 = vpack.c.b16 %v264, %v263
  %v358 = vpack.c.b16 %v266, %v265
  %v359 = vpack.c.b16 %v268, %v267
  %v360 = vpack.c.b16 %v270, %v269
  %v361 = vpack.c.b16 %v272, %v271
  %v362 = vpack.c.b16 %v274, %v273
  %v363 = vpack.c.b16 %v276, %v275
  %v364 = vpack.c.b16 %v278, %v277
  %v365 = vpack.c.b16 %v280, %v279
  %v366 = vpack.c.b16 %v282, %v281
  %v367 = vpack.c.b16 %v284, %v283
  %v368 = vpack.c.b16 %v286, %v285
  %v369 = vpack.c.b16 %v288, %v287
  %v370 = vpack.c.b16 %v290, %v289
  %v371 = vpack.c.b16 %v292, %v291
  %v372 = vpack.c.b16 %v294, %v293
  %v373 = vpack.c.b16 %v296, %v295
  %v374 = vpack.c.b16 %v298, %v297
  %v375 = vpack.c.b16 %v300, %v299
  %v376 = vpack.c.b16 %v302, %v301
  %v377 = vpack.c.b16 %v304, %v303
  %v378 = vpack.c.b16 %v306, %v305
  %v379 = vpack.c.b16 %v308, %v307
  %v380 = vpack.c.b16 %v310, %v309
  %v381 = vpack.c.b16 %v312, %v311
  %v382 = vpack.c.b16 %v314, %v313
  %v383 = vpack.c.b16 %v316, %v315
  %v384 = vpack.c.b16 %v318, %v317
  %v385 = vpack.c.b16 %v320, %v319
  %v386 = vpack.c.b16 %v322, %v321
  %v387 = vpack.c.b16 %v324, %v323
  %v388 = vpack.c.b16 %v326, %v325
  %v389 = vpack.c.b16 %v328, %v327
  %v390 = vpack.c.b16 %v330, %v329
  %v391 = vpack.c.b16 %v332, %v331
  %v392 = vpack.c.b16 %v334, %v333
  %v393 = vpack.c.b16 %v336, %v335
  %v394 = vpack.c.b16 %v338, %v337
  %v395 = vpack.c.b16 %v340, %v339
  %v396 = vpack.c.b16 %v342, %v341
  %v397 = vpack.c.b16 %v344, %v343
  %v398 = vpack.c.b16 %v346, %v345
  %v399 = vpack.c.b16 %v348, %v347
  %v400 = vpack.c.b16 %v350, %v349
  %v401 = vpack.c.b16 %v352, %v351
  %v402 = vpack.c.b16 %v354, %v353
  %451 = vmatprep.subr.bf16.mxu0 0
  %452 = vmatpush1.bf16.msra.mxu0 %v362
  %453 = vmatprep.subr.bf16.mxu0 0
  %454 = vmatpush1.bf16.msra.mxu0 %v361
  %455 = vmatprep.subr.bf16.mxu0 0
  %456 = vmatpush1.bf16.msra.mxu0 %v360
  %457 = vmatprep.subr.bf16.mxu0 0
  %458 = vmatpush1.bf16.msra.mxu0 %v359
  %459 = vmatprep.subr.bf16.mxu0 0
  %460 = vmatpush1.bf16.msra.mxu0 %v358
  %461 = vmatprep.subr.bf16.mxu0 0
  %462 = vmatpush1.bf16.msra.mxu0 %v357
  %463 = vmatprep.subr.bf16.mxu0 0
  %464 = vmatpush1.bf16.msra.mxu0 %v356
  %465 = vmatprep.subr.bf16.mxu0 0
  %466 = vmatpush1.bf16.msra.mxu0 %v355
  %467 = vmatprep.subr.bf16.mxu0 0
  %468 = vmatpush2.bf16.msra.mxu0 %v370
  %469 = vmatprep.subr.bf16.mxu0 0
  %470 = vmatpush2.bf16.msra.mxu0 %v369
  %471 = vmatprep.subr.bf16.mxu0 0
  %472 = vmatpush2.bf16.msra.mxu0 %v368
  %473 = vmatprep.subr.bf16.mxu0 0
  %474 = vmatpush2.bf16.msra.mxu0 %v367
  %475 = vmatprep.subr.bf16.mxu0 0
  %476 = vmatpush2.bf16.msra.mxu0 %v366
  %477 = vmatprep.subr.bf16.mxu0 0
  %478 = vmatpush2.bf16.msra.mxu0 %v365
  %479 = vmatprep.subr.bf16.mxu0 0
  %480 = vmatpush2.bf16.msra.mxu0 %v364
  %481 = vmatprep.subr.bf16.mxu0 0
  %482 = vmatpush2.bf16.msra.mxu0 %v363
  %483 = vmatprep.mubr.bf16.mxu0 %v152
  %484 = vmatmul.mubr.bf16.gmra.mxu0 %v151
  %v485 = vpop.f32.mrf.mxu0
  %v486 = vadd.f32 %v131, %v485
  %v487 = vpop.f32.mrf.mxu0
  %v488 = vpop.f32.mrf.mxu0
  %v489 = vadd.f32 %v131, %v488
  %v490 = vpop.f32.mrf.mxu0
  %491 = vdwg.mxu0
  %492 = vmatprep.subr.bf16.mxu0 0
  %493 = vmatpush1.bf16.msra.mxu0 %v378
  %494 = vmatprep.subr.bf16.mxu0 0
  %495 = vmatpush1.bf16.msra.mxu0 %v377
  %496 = vmatprep.subr.bf16.mxu0 0
  %497 = vmatpush1.bf16.msra.mxu0 %v376
  %498 = vmatprep.subr.bf16.mxu0 0
  %499 = vmatpush1.bf16.msra.mxu0 %v375
  %500 = vmatprep.subr.bf16.mxu0 0
  %501 = vmatpush1.bf16.msra.mxu0 %v374
  %502 = vmatprep.subr.bf16.mxu0 0
  %503 = vmatpush1.bf16.msra.mxu0 %v373
  %504 = vmatprep.subr.bf16.mxu0 0
  %505 = vmatpush1.bf16.msra.mxu0 %v372
  %506 = vmatprep.subr.bf16.mxu0 0
  %507 = vmatpush1.bf16.msra.mxu0 %v371
  %508 = vmatprep.subr.bf16.mxu0 0
  %509 = vmatpush2.bf16.msra.mxu0 %v386
  %510 = vmatprep.subr.bf16.mxu0 0
  %511 = vmatpush2.bf16.msra.mxu0 %v385
  %512 = vmatprep.subr.bf16.mxu0 0
  %513 = vmatpush2.bf16.msra.mxu0 %v384
  %514 = vmatprep.subr.bf16.mxu0 0
  %515 = vmatpush2.bf16.msra.mxu0 %v383
  %516 = vmatprep.subr.bf16.mxu0 0
  %517 = vmatpush2.bf16.msra.mxu0 %v382
  %518 = vmatprep.subr.bf16.mxu0 0
  %519 = vmatpush2.bf16.msra.mxu0 %v381
  %520 = vmatprep.subr.bf16.mxu0 0
  %521 = vmatpush2.bf16.msra.mxu0 %v380
  %522 = vmatprep.subr.bf16.mxu0 0
  %523 = vmatpush2.bf16.msra.mxu0 %v379
  %524 = vmatprep.mubr.bf16.mxu0 %v154
  %525 = vmatmul.mubr.bf16.gmra.mxu0 %v153
  %v526 = vpop.f32.mrf.mxu0
  %v527 = vadd.f32 %v486, %v526
  %v528 = vpop.f32.mrf.mxu0
  %v529 = vpop.f32.mrf.mxu0
  %v530 = vadd.f32 %v489, %v529
  %v531 = vpop.f32.mrf.mxu0
  %532 = vdwg.mxu0
  %533 = vmatprep.subr.bf16.mxu0 0
  %534 = vmatpush1.bf16.msra.mxu0 %v394
  %535 = vmatprep.subr.bf16.mxu0 0
  %536 = vmatpush1.bf16.msra.mxu0 %v393
  %537 = vmatprep.subr.bf16.mxu0 0
  %538 = vmatpush1.bf16.msra.mxu0 %v392
  %539 = vmatprep.subr.bf16.mxu0 0
  %540 = vmatpush1.bf16.msra.mxu0 %v391
  %541 = vmatprep.subr.bf16.mxu0 0
  %542 = vmatpush1.bf16.msra.mxu0 %v390
  %543 = vmatprep.subr.bf16.mxu0 0
  %544 = vmatpush1.bf16.msra.mxu0 %v389
  %545 = vmatprep.subr.bf16.mxu0 0
  %546 = vmatpush1.bf16.msra.mxu0 %v388
  %547 = vmatprep.subr.bf16.mxu0 0
  %548 = vmatpush1.bf16.msra.mxu0 %v387
  %549 = vmatprep.subr.bf16.mxu0 0
  %550 = vmatpush2.bf16.msra.mxu0 %v402
  %551 = vmatprep.subr.bf16.mxu0 0
  %552 = vmatpush2.bf16.msra.mxu0 %v401
  %553 = vmatprep.subr.bf16.mxu0 0
  %554 = vmatpush2.bf16.msra.mxu0 %v400
  %555 = vmatprep.subr.bf16.mxu0 0
  %556 = vmatpush2.bf16.msra.mxu0 %v399
  %557 = vmatprep.subr.bf16.mxu0 0
  %558 = vmatpush2.bf16.msra.mxu0 %v398
  %559 = vmatprep.subr.bf16.mxu0 0
  %560 = vmatpush2.bf16.msra.mxu0 %v397
  %561 = vmatprep.subr.bf16.mxu0 0
  %562 = vmatpush2.bf16.msra.mxu0 %v396
  %563 = vmatprep.subr.bf16.mxu0 0
  %564 = vmatpush2.bf16.msra.mxu0 %v395
  %565 = vmatprep.mubr.bf16.mxu0 %v156
  %566 = vmatmul.mubr.bf16.gmra.mxu0 %v155
  %v567 = vpop.f32.mrf.mxu0
  %v568 = vadd.f32 %v527, %v567
  %v569 = vpop.f32.mrf.mxu0
  %v570 = vpop.f32.mrf.mxu0
  %v571 = vadd.f32 %v530, %v570
  %v572 = vpop.f32.mrf.mxu0
  %573 = vdwg.mxu0
  %574 = vst [vmem:[#allocation2] sm:$0xff] %v568
  %575 = vst [vmem:[#allocation2 + $0x8] sm:$0xff] %v571
  %v576 = vld [vmem:[%s2] sm:$0xf]
  %v577 = vld [vmem:[%s2 + $0x4] sm:$0xf]
  %v578 = vld [vmem:[%s2 + $0x8] sm:$0xf]
  %v579 = vld [vmem:[%s2 + $0xc] sm:$0xf]
  %v580 = vld [vmem:[#allocation2] sm:$0x3]
  %v585 = vunpack.c.l.b16 %v576
  %v586 = vunpack.c.l.b16 %v577
  %v587 = vunpack.c.l.b16 %v578
  %v588 = vunpack.c.l.b16 %v579
  %v589 = vpack.c.b16 %v586, %v585
  %v590 = vpack.c.b16 %v588, %v587
  %vm593 = vcmask 261120
  %v595 = vsel %vm593, 0, 0
  %597 = vmatprep.subr.bf16.mxu0 0
  %598 = vmatpush1.bf16.msra.mxu0 0
  %599 = vmatprep.subr.bf16.mxu0 0
  %600 = vmatpush1.bf16.msra.mxu0 0
  %601 = vmatprep.subr.bf16.mxu0 0
  %602 = vmatpush1.bf16.msra.mxu0 0
  %603 = vmatprep.subr.bf16.mxu0 0
  %604 = vmatpush1.bf16.msra.mxu0 0
  %605 = vmatprep.subr.bf16.mxu0 0
  %606 = vmatpush1.bf16.msra.mxu0 0
  %607 = vmatprep.subr.bf16.mxu0 0
  %608 = vmatpush1.bf16.msra.mxu0 0
  %609 = vmatprep.subr.bf16.mxu0 0
  %610 = vmatpush1.bf16.msra.mxu0 %v590
  %611 = vmatprep.subr.bf16.mxu0 0
  %612 = vmatpush1.bf16.msra.mxu0 %v589
  %613 = vmatprep.subr.bf16.mxu0 0
  %614 = vmatpush2.bf16.msra.mxu0 0
  %615 = vmatprep.subr.bf16.mxu0 0
  %616 = vmatpush2.bf16.msra.mxu0 0
  %617 = vmatprep.subr.bf16.mxu0 0
  %618 = vmatpush2.bf16.msra.mxu0 0
  %619 = vmatprep.subr.bf16.mxu0 0
  %620 = vmatpush2.bf16.msra.mxu0 0
  %621 = vmatprep.subr.bf16.mxu0 0
  %622 = vmatpush2.bf16.msra.mxu0 0
  %623 = vmatprep.subr.bf16.mxu0 0
  %624 = vmatpush2.bf16.msra.mxu0 0
  %625 = vmatprep.subr.bf16.mxu0 0
  %626 = vmatpush2.bf16.msra.mxu0 0
  %627 = vmatprep.subr.bf16.mxu0 0
  %628 = vmatpush2.bf16.msra.mxu0 0
  %629 = vmatprep.mubr.bf16.mxu0 0
  %630 = vmatmul.mubr.bf16.gmra.mxu0 %v595
  %v631 = vpop.f32.mrf.mxu0
  %v632 = vadd.f32 0.0, %v631
  %v633 = vpop.f32.mrf.mxu0
  %v634 = vpop.f32.mrf.mxu0
  %v635 = vpop.f32.mrf.mxu0
  %636 = vdwg.mxu0
  %v637 = vadd.f32 %v580, %v632
  %v638 = vmul.f32 %v637, 0.5
  %v639 = vtanh.pop %v638
  %v640 = vmul.f32 %v639, 0.5
  %v641 = vadd.f32 %v640, 0.5
  %v642 = vtanh.pop %v637
  %v643 = vmul.f32 %v641, 0.0
  %645 = vrot.lane.b32.xlu0 %v642, 64
  %v646 = vpop.permute.xlu0 %645
  %v648 = vmul.f32 %v641, %v646
  %650 = vrot.lane.b32.xlu0 %v648, 32
  %v651 = vpop.permute.xlu0 %650
  %v653 = vadd.f32 %v643, %v651
  %v654 = vtanh.pop %v653
  %656 = vrot.lane.b32.xlu0 %v654, 64
  %v657 = vpop.permute.xlu0 %656
  %v659 = vmul.f32 %v641, %v657
  %v660 = vpack.c.bf16 %v659, %v659
  %v662 = vunpack.c.l.b16 %v660
  %v663 = vpack.c.b16 %v662, %v662
  %664 = vrot.lane.b32.xlu0 %v663, 32
  %v665 = vpop.permute.xlu0 %664
  %vm667 = vcmask 253952
  %668 = vst.msk [vmem:[#allocation3] sm:$0x1] %vm667, %v665
  %v669 = vld [vmem:[#allocation2 + $0x2] sm:$0x3]
  %670 = vrot.lane.b32.xlu0 %v660, 32
  %v671 = vpop.permute.xlu0 %670
  %v673 = vsel %vm593, %v671, 0
  %675 = vmatprep.subr.bf16.mxu0 0
  %676 = vmatpush1.bf16.msra.mxu0 0
  %677 = vmatprep.subr.bf16.mxu0 0
  %678 = vmatpush1.bf16.msra.mxu0 0
  %679 = vmatprep.subr.bf16.mxu0 0
  %680 = vmatpush1.bf16.msra.mxu0 0
  %681 = vmatprep.subr.bf16.mxu0 0
  %682 = vmatpush1.bf16.msra.mxu0 0
  %683 = vmatprep.subr.bf16.mxu0 0
  %684 = vmatpush1.bf16.msra.mxu0 0
  %685 = vmatprep.subr.bf16.mxu0 0
  %686 = vmatpush1.bf16.msra.mxu0 0
  %687 = vmatprep.subr.bf16.mxu0 0
  %688 = vmatpush1.bf16.msra.mxu0 %v590
  %689 = vmatprep.subr.bf16.mxu0 0
  %690 = vmatpush1.bf16.msra.mxu0 %v589
  %691 = vmatprep.subr.bf16.mxu0 0
  %692 = vmatpush2.bf16.msra.mxu0 0
  %693 = vmatprep.subr.bf16.mxu0 0
  %694 = vmatpush2.bf16.msra.mxu0 0
  %695 = vmatprep.subr.bf16.mxu0 0
  %696 = vmatpush2.bf16.msra.mxu0 0
  %697 = vmatprep.subr.bf16.mxu0 0
  %698 = vmatpush2.bf16.msra.mxu0 0
  %699 = vmatprep.subr.bf16.mxu0 0
  %700 = vmatpush2.bf16.msra.mxu0 0
  %701 = vmatprep.subr.bf16.mxu0 0
  %702 = vmatpush2.bf16.msra.mxu0 0
  %703 = vmatprep.subr.bf16.mxu0 0
  %704 = vmatpush2.bf16.msra.mxu0 0
  %705 = vmatprep.subr.bf16.mxu0 0
  %706 = vmatpush2.bf16.msra.mxu0 0
  %707 = vmatprep.mubr.bf16.mxu0 0
  %708 = vmatmul.mubr.bf16.gmra.mxu0 %v673
  %v709 = vpop.f32.mrf.mxu0
  %v710 = vadd.f32 0.0, %v709
  %v711 = vpop.f32.mrf.mxu0
  %v712 = vpop.f32.mrf.mxu0
  %v713 = vpop.f32.mrf.mxu0
  %714 = vdwg.mxu0
  %v715 = vadd.f32 %v669, %v710
  %v716 = vmul.f32 %v715, 0.5
  %v717 = vtanh.pop %v716
  %v718 = vmul.f32 %v717, 0.5
  %v719 = vadd.f32 %v718, 0.5
  %v720 = vtanh.pop %v715
  %v721 = vmul.f32 %v719, %v653
  %723 = vrot.lane.b32.xlu0 %v720, 64
  %v724 = vpop.permute.xlu0 %723
  %v726 = vmul.f32 %v719, %v724
  %728 = vrot.lane.b32.xlu0 %v726, 32
  %v729 = vpop.permute.xlu0 %728
  %v731 = vadd.f32 %v721, %v729
  %v732 = vtanh.pop %v731
  %734 = vrot.lane.b32.xlu0 %v732, 64
  %v735 = vpop.permute.xlu0 %734
  %v737 = vmul.f32 %v719, %v735
  %v738 = vpack.c.bf16 %v737, %v737
  %v740 = vunpack.c.l.b16 %v738
  %v741 = vpack.c.b16 %v740, %v740
  %v742 = vrot.slane %v741, 7
  %743 = vrot.lane.b32.xlu0 %v742, 32
  %v744 = vpop.permute.xlu0 %743
  %vm746 = vcmask 254977
  %747 = vst.msk [vmem:[#allocation3] sm:$0x2] %vm746, %v744
  %v748 = vld [vmem:[#allocation2 + $0x4] sm:$0x3]
  %749 = vrot.lane.b32.xlu0 %v738, 32
  %v750 = vpop.permute.xlu0 %749
  %v752 = vsel %vm593, %v750, 0
  %754 = vmatprep.subr.bf16.mxu0 0
  %755 = vmatpush1.bf16.msra.mxu0 0
  %756 = vmatprep.subr.bf16.mxu0 0
  %757 = vmatpush1.bf16.msra.mxu0 0
  %758 = vmatprep.subr.bf16.mxu0 0
  %759 = vmatpush1.bf16.msra.mxu0 0
  %760 = vmatprep.subr.bf16.mxu0 0
  %761 = vmatpush1.bf16.msra.mxu0 0
  %762 = vmatprep.subr.bf16.mxu0 0
  %763 = vmatpush1.bf16.msra.mxu0 0
  %764 = vmatprep.subr.bf16.mxu0 0
  %765 = vmatpush1.bf16.msra.mxu0 0
  %766 = vmatprep.subr.bf16.mxu0 0
  %767 = vmatpush1.bf16.msra.mxu0 %v590
  %768 = vmatprep.subr.bf16.mxu0 0
  %769 = vmatpush1.bf16.msra.mxu0 %v589
  %770 = vmatprep.subr.bf16.mxu0 0
  %771 = vmatpush2.bf16.msra.mxu0 0
  %772 = vmatprep.subr.bf16.mxu0 0
  %773 = vmatpush2.bf16.msra.mxu0 0
  %774 = vmatprep.subr.bf16.mxu0 0
  %775 = vmatpush2.bf16.msra.mxu0 0
  %776 = vmatprep.subr.bf16.mxu0 0
  %777 = vmatpush2.bf16.msra.mxu0 0
  %778 = vmatprep.subr.bf16.mxu0 0
  %779 = vmatpush2.bf16.msra.mxu0 0
  %780 = vmatprep.subr.bf16.mxu0 0
  %781 = vmatpush2.bf16.msra.mxu0 0
  %782 = vmatprep.subr.bf16.mxu0 0
  %783 = vmatpush2.bf16.msra.mxu0 0
  %784 = vmatprep.subr.bf16.mxu0 0
  %785 = vmatpush2.bf16.msra.mxu0 0
  %786 = vmatprep.mubr.bf16.mxu0 0
  %787 = vmatmul.mubr.bf16.gmra.mxu0 %v752
  %v788 = vpop.f32.mrf.mxu0
  %v789 = vadd.f32 0.0, %v788
  %v790 = vpop.f32.mrf.mxu0
  %v791 = vpop.f32.mrf.mxu0
  %v792 = vpop.f32.mrf.mxu0
  %793 = vdwg.mxu0
  %v794 = vadd.f32 %v748, %v789
  %v795 = vmul.f32 %v794, 0.5
  %v796 = vtanh.pop %v795
  %v797 = vmul.f32 %v796, 0.5
  %v798 = vadd.f32 %v797, 0.5
  %v799 = vtanh.pop %v794
  %v800 = vmul.f32 %v798, %v731
  %802 = vrot.lane.b32.xlu0 %v799, 64
  %v803 = vpop.permute.xlu0 %802
  %v805 = vmul.f32 %v798, %v803
  %807 = vrot.lane.b32.xlu0 %v805, 32
  %v808 = vpop.permute.xlu0 %807
  %v810 = vadd.f32 %v800, %v808
  %v811 = vtanh.pop %v810
  %813 = vrot.lane.b32.xlu0 %v811, 64
  %v814 = vpop.permute.xlu0 %813
  %v816 = vmul.f32 %v798, %v814
  %v817 = vpack.c.bf16 %v816, %v816
  %v819 = vunpack.c.l.b16 %v817
  %v820 = vpack.c.b16 %v819, %v819
  %v821 = vrot.slane %v820, 6
  %822 = vrot.lane.b32.xlu0 %v821, 32
  %v823 = vpop.permute.xlu0 %822
  %vm825 = vcmask 256002
  %826 = vst.msk [vmem:[#allocation3] sm:$0x4] %vm825, %v823
  %v827 = vld [vmem:[#allocation2 + $0x6] sm:$0x3]
  %828 = vrot.lane.b32.xlu0 %v817, 32
  %v829 = vpop.permute.xlu0 %828
  %v831 = vsel %vm593, %v829, 0
  %833 = vmatprep.subr.bf16.mxu0 0
  %834 = vmatpush1.bf16.msra.mxu0 0
  %835 = vmatprep.subr.bf16.mxu0 0
  %836 = vmatpush1.bf16.msra.mxu0 0
  %837 = vmatprep.subr.bf16.mxu0 0
  %838 = vmatpush1.bf16.msra.mxu0 0
  %839 = vmatprep.subr.bf16.mxu0 0
  %840 = vmatpush1.bf16.msra.mxu0 0
  %841 = vmatprep.subr.bf16.mxu0 0
  %842 = vmatpush1.bf16.msra.mxu0 0
  %843 = vmatprep.subr.bf16.mxu0 0
  %844 = vmatpush1.bf16.msra.mxu0 0
  %845 = vmatprep.subr.bf16.mxu0 0
  %846 = vmatpush1.bf16.msra.mxu0 %v590
  %847 = vmatprep.subr.bf16.mxu0 0
  %848 = vmatpush1.bf16.msra.mxu0 %v589
  %849 = vmatprep.subr.bf16.mxu0 0
  %850 = vmatpush2.bf16.msra.mxu0 0
  %851 = vmatprep.subr.bf16.mxu0 0
  %852 = vmatpush2.bf16.msra.mxu0 0
  %853 = vmatprep.subr.bf16.mxu0 0
  %854 = vmatpush2.bf16.msra.mxu0 0
  %855 = vmatprep.subr.bf16.mxu0 0
  %856 = vmatpush2.bf16.msra.mxu0 0
  %857 = vmatprep.subr.bf16.mxu0 0
  %858 = vmatpush2.bf16.msra.mxu0 0
  %859 = vmatprep.subr.bf16.mxu0 0
  %860 = vmatpush2.bf16.msra.mxu0 0
  %861 = vmatprep.subr.bf16.mxu0 0
  %862 = vmatpush2.bf16.msra.mxu0 0
  %863 = vmatprep.subr.bf16.mxu0 0
  %864 = vmatpush2.bf16.msra.mxu0 0
  %865 = vmatprep.mubr.bf16.mxu0 0
  %866 = vmatmul.mubr.bf16.gmra.mxu0 %v831
  %v867 = vpop.f32.mrf.mxu0
  %v868 = vadd.f32 0.0, %v867
  %v869 = vpop.f32.mrf.mxu0
  %v870 = vpop.f32.mrf.mxu0
  %v871 = vpop.f32.mrf.mxu0
  %872 = vdwg.mxu0
  %v873 = vadd.f32 %v827, %v868
  %v874 = vmul.f32 %v873, 0.5
  %v875 = vtanh.pop %v874
  %v876 = vmul.f32 %v875, 0.5
  %v877 = vadd.f32 %v876, 0.5
  %v878 = vtanh.pop %v873
  %v879 = vmul.f32 %v877, %v810
  %881 = vrot.lane.b32.xlu0 %v878, 64
  %v882 = vpop.permute.xlu0 %881
  %v884 = vmul.f32 %v877, %v882
  %886 = vrot.lane.b32.xlu0 %v884, 32
  %v887 = vpop.permute.xlu0 %886
  %v889 = vadd.f32 %v879, %v887
  %v890 = vtanh.pop %v889
  %892 = vrot.lane.b32.xlu0 %v890, 64
  %v893 = vpop.permute.xlu0 %892
  %v895 = vmul.f32 %v877, %v893
  %v896 = vpack.c.bf16 %v895, %v895
  %v898 = vunpack.c.l.b16 %v896
  %v899 = vpack.c.b16 %v898, %v898
  %v900 = vrot.slane %v899, 5
  %901 = vrot.lane.b32.xlu0 %v900, 32
  %v902 = vpop.permute.xlu0 %901
  %vm904 = vcmask 257027
  %905 = vst.msk [vmem:[#allocation3] sm:$0x8] %vm904, %v902
  %v906 = vld [vmem:[#allocation2 + $0x8] sm:$0x3]
  %907 = vrot.lane.b32.xlu0 %v896, 32
  %v908 = vpop.permute.xlu0 %907
  %v910 = vsel %vm593, %v908, 0
  %912 = vmatprep.subr.bf16.mxu0 0
  %913 = vmatpush1.bf16.msra.mxu0 0
  %914 = vmatprep.subr.bf16.mxu0 0
  %915 = vmatpush1.bf16.msra.mxu0 0
  %916 = vmatprep.subr.bf16.mxu0 0
  %917 = vmatpush1.bf16.msra.mxu0 0
  %918 = vmatprep.subr.bf16.mxu0 0
  %919 = vmatpush1.bf16.msra.mxu0 0
  %920 = vmatprep.subr.bf16.mxu0 0
  %921 = vmatpush1.bf16.msra.mxu0 0
  %922 = vmatprep.subr.bf16.mxu0 0
  %923 = vmatpush1.bf16.msra.mxu0 0
  %924 = vmatprep.subr.bf16.mxu0 0
  %925 = vmatpush1.bf16.msra.mxu0 %v590
  %926 = vmatprep.subr.bf16.mxu0 0
  %927 = vmatpush1.bf16.msra.mxu0 %v589
  %928 = vmatprep.subr.bf16.mxu0 0
  %929 = vmatpush2.bf16.msra.mxu0 0
  %930 = vmatprep.subr.bf16.mxu0 0
  %931 = vmatpush2.bf16.msra.mxu0 0
  %932 = vmatprep.subr.bf16.mxu0 0
  %933 = vmatpush2.bf16.msra.mxu0 0
  %934 = vmatprep.subr.bf16.mxu0 0
  %935 = vmatpush2.bf16.msra.mxu0 0
  %936 = vmatprep.subr.bf16.mxu0 0
  %937 = vmatpush2.bf16.msra.mxu0 0
  %938 = vmatprep.subr.bf16.mxu0 0
  %939 = vmatpush2.bf16.msra.mxu0 0
  %940 = vmatprep.subr.bf16.mxu0 0
  %941 = vmatpush2.bf16.msra.mxu0 0
  %942 = vmatprep.subr.bf16.mxu0 0
  %943 = vmatpush2.bf16.msra.mxu0 0
  %944 = vmatprep.mubr.bf16.mxu0 0
  %945 = vmatmul.mubr.bf16.gmra.mxu0 %v910
  %v946 = vpop.f32.mrf.mxu0
  %v947 = vadd.f32 0.0, %v946
  %v948 = vpop.f32.mrf.mxu0
  %v949 = vpop.f32.mrf.mxu0
  %v950 = vpop.f32.mrf.mxu0
  %951 = vdwg.mxu0
  %v952 = vadd.f32 %v906, %v947
  %v953 = vmul.f32 %v952, 0.5
  %v954 = vtanh.pop %v953
  %v955 = vmul.f32 %v954, 0.5
  %v956 = vadd.f32 %v955, 0.5
  %v957 = vtanh.pop %v952
  %v958 = vmul.f32 %v956, %v889
  %960 = vrot.lane.b32.xlu0 %v957, 64
  %v961 = vpop.permute.xlu0 %960
  %v963 = vmul.f32 %v956, %v961
  %965 = vrot.lane.b32.xlu0 %v963, 32
  %v966 = vpop.permute.xlu0 %965
  %v968 = vadd.f32 %v958, %v966
  %v969 = vtanh.pop %v968
  %971 = vrot.lane.b32.xlu0 %v969, 64
  %v972 = vpop.permute.xlu0 %971
  %v974 = vmul.f32 %v956, %v972
  %v975 = vpack.c.bf16 %v974, %v974
  %v977 = vunpack.c.l.b16 %v975
  %v978 = vpack.c.b16 %v977, %v977
  %979 = vrot.lane.b32.xlu0 %v978, 32
  %v980 = vpop.permute.xlu0 %979
  %982 = vst.msk [vmem:[#allocation3 + $0x4] sm:$0x1] %vm667, %v980
  %v983 = vld [vmem:[#allocation2 + $0xa] sm:$0x3]
  %984 = vrot.lane.b32.xlu0 %v975, 32
  %v985 = vpop.permute.xlu0 %984
  %v987 = vsel %vm593, %v985, 0
  %989 = vmatprep.subr.bf16.mxu0 0
  %990 = vmatpush1.bf16.msra.mxu0 0
  %991 = vmatprep.subr.bf16.mxu0 0
  %992 = vmatpush1.bf16.msra.mxu0 0
  %993 = vmatprep.subr.bf16.mxu0 0
  %994 = vmatpush1.bf16.msra.mxu0 0
  %995 = vmatprep.subr.bf16.mxu0 0
  %996 = vmatpush1.bf16.msra.mxu0 0
  %997 = vmatprep.subr.bf16.mxu0 0
  %998 = vmatpush1.bf16.msra.mxu0 0
  %999 = vmatprep.subr.bf16.mxu0 0
  %1000 = vmatpush1.bf16.msra.mxu0 0
  %1001 = vmatprep.subr.bf16.mxu0 0
  %1002 = vmatpush1.bf16.msra.mxu0 %v590
  %1003 = vmatprep.subr.bf16.mxu0 0
  %1004 = vmatpush1.bf16.msra.mxu0 %v589
  %1005 = vmatprep.subr.bf16.mxu0 0
  %1006 = vmatpush2.bf16.msra.mxu0 0
  %1007 = vmatprep.subr.bf16.mxu0 0
  %1008 = vmatpush2.bf16.msra.mxu0 0
  %1009 = vmatprep.subr.bf16.mxu0 0
  %1010 = vmatpush2.bf16.msra.mxu0 0
  %1011 = vmatprep.subr.bf16.mxu0 0
  %1012 = vmatpush2.bf16.msra.mxu0 0
  %1013 = vmatprep.subr.bf16.mxu0 0
  %1014 = vmatpush2.bf16.msra.mxu0 0
  %1015 = vmatprep.subr.bf16.mxu0 0
  %1016 = vmatpush2.bf16.msra.mxu0 0
  %1017 = vmatprep.subr.bf16.mxu0 0
  %1018 = vmatpush2.bf16.msra.mxu0 0
  %1019 = vmatprep.subr.bf16.mxu0 0
  %1020 = vmatpush2.bf16.msra.mxu0 0
  %1021 = vmatprep.mubr.bf16.mxu0 0
  %1022 = vmatmul.mubr.bf16.gmra.mxu0 %v987
  %v1023 = vpop.f32.mrf.mxu0
  %v1024 = vadd.f32 0.0, %v1023
  %v1025 = vpop.f32.mrf.mxu0
  %v1026 = vpop.f32.mrf.mxu0
  %v1027 = vpop.f32.mrf.mxu0
  %1028 = vdwg.mxu0
  %v1029 = vadd.f32 %v983, %v1024
  %v1030 = vmul.f32 %v1029, 0.5
  %v1031 = vtanh.pop %v1030
  %v1032 = vmul.f32 %v1031, 0.5
  %v1033 = vadd.f32 %v1032, 0.5
  %v1034 = vtanh.pop %v1029
  %v1035 = vmul.f32 %v1033, %v968
  %1037 = vrot.lane.b32.xlu0 %v1034, 64
  %v1038 = vpop.permute.xlu0 %1037
  %v1040 = vmul.f32 %v1033, %v1038
  %1042 = vrot.lane.b32.xlu0 %v1040, 32
  %v1043 = vpop.permute.xlu0 %1042
  %v1045 = vadd.f32 %v1035, %v1043
  %v1046 = vtanh.pop %v1045
  %1048 = vrot.lane.b32.xlu0 %v1046, 64
  %v1049 = vpop.permute.xlu0 %1048
  %v1051 = vmul.f32 %v1033, %v1049
  %v1052 = vpack.c.bf16 %v1051, %v1051
  %v1054 = vunpack.c.l.b16 %v1052
  %v1055 = vpack.c.b16 %v1054, %v1054
  %v1056 = vrot.slane %v1055, 7
  %1057 = vrot.lane.b32.xlu0 %v1056, 32
  %v1058 = vpop.permute.xlu0 %1057
  %1060 = vst.msk [vmem:[#allocation3 + $0x4] sm:$0x2] %vm746, %v1058
  %v1061 = vld [vmem:[#allocation2 + $0xc] sm:$0x3]
  %1062 = vrot.lane.b32.xlu0 %v1052, 32
  %v1063 = vpop.permute.xlu0 %1062
  %v1065 = vsel %vm593, %v1063, 0
  %1067 = vmatprep.subr.bf16.mxu0 0
  %1068 = vmatpush1.bf16.msra.mxu0 0
  %1069 = vmatprep.subr.bf16.mxu0 0
  %1070 = vmatpush1.bf16.msra.mxu0 0
  %1071 = vmatprep.subr.bf16.mxu0 0
  %1072 = vmatpush1.bf16.msra.mxu0 0
  %1073 = vmatprep.subr.bf16.mxu0 0
  %1074 = vmatpush1.bf16.msra.mxu0 0
  %1075 = vmatprep.subr.bf16.mxu0 0
  %1076 = vmatpush1.bf16.msra.mxu0 0
  %1077 = vmatprep.subr.bf16.mxu0 0
  %1078 = vmatpush1.bf16.msra.mxu0 0
  %1079 = vmatprep.subr.bf16.mxu0 0
  %1080 = vmatpush1.bf16.msra.mxu0 %v590
  %1081 = vmatprep.subr.bf16.mxu0 0
  %1082 = vmatpush1.bf16.msra.mxu0 %v589
  %1083 = vmatprep.subr.bf16.mxu0 0
  %1084 = vmatpush2.bf16.msra.mxu0 0
  %1085 = vmatprep.subr.bf16.mxu0 0
  %1086 = vmatpush2.bf16.msra.mxu0 0
  %1087 = vmatprep.subr.bf16.mxu0 0
  %1088 = vmatpush2.bf16.msra.mxu0 0
  %1089 = vmatprep.subr.bf16.mxu0 0
  %1090 = vmatpush2.bf16.msra.mxu0 0
  %1091 = vmatprep.subr.bf16.mxu0 0
  %1092 = vmatpush2.bf16.msra.mxu0 0
  %1093 = vmatprep.subr.bf16.mxu0 0
  %1094 = vmatpush2.bf16.msra.mxu0 0
  %1095 = vmatprep.subr.bf16.mxu0 0
  %1096 = vmatpush2.bf16.msra.mxu0 0
  %1097 = vmatprep.subr.bf16.mxu0 0
  %1098 = vmatpush2.bf16.msra.mxu0 0
  %1099 = vmatprep.mubr.bf16.mxu0 0
  %1100 = vmatmul.mubr.bf16.gmra.mxu0 %v1065
  %v1101 = vpop.f32.mrf.mxu0
  %v1102 = vadd.f32 0.0, %v1101
  %v1103 = vpop.f32.mrf.mxu0
  %v1104 = vpop.f32.mrf.mxu0
  %v1105 = vpop.f32.mrf.mxu0
  %1106 = vdwg.mxu0
  %v1107 = vadd.f32 %v1061, %v1102
  %v1108 = vmul.f32 %v1107, 0.5
  %v1109 = vtanh.pop %v1108
  %v1110 = vmul.f32 %v1109, 0.5
  %v1111 = vadd.f32 %v1110, 0.5
  %v1112 = vtanh.pop %v1107
  %v1113 = vmul.f32 %v1111, %v1045
  %1115 = vrot.lane.b32.xlu0 %v1112, 64
  %v1116 = vpop.permute.xlu0 %1115
  %v1118 = vmul.f32 %v1111, %v1116
  %1120 = vrot.lane.b32.xlu0 %v1118, 32
  %v1121 = vpop.permute.xlu0 %1120
  %v1123 = vadd.f32 %v1113, %v1121
  %v1124 = vtanh.pop %v1123
  %1126 = vrot.lane.b32.xlu0 %v1124, 64
  %v1127 = vpop.permute.xlu0 %1126
  %v1129 = vmul.f32 %v1111, %v1127
  %v1130 = vpack.c.bf16 %v1129, %v1129
  %v1132 = vunpack.c.l.b16 %v1130
  %v1133 = vpack.c.b16 %v1132, %v1132
  %v1134 = vrot.slane %v1133, 6
  %1135 = vrot.lane.b32.xlu0 %v1134, 32
  %v1136 = vpop.permute.xlu0 %1135
  %1138 = vst.msk [vmem:[#allocation3 + $0x4] sm:$0x4] %vm825, %v1136
  %v1139 = vld [vmem:[#allocation2 + $0xe] sm:$0x3]
  %1140 = vrot.lane.b32.xlu0 %v1130, 32
  %v1141 = vpop.permute.xlu0 %1140
  %v1143 = vsel %vm593, %v1141, 0
  %1145 = vmatprep.subr.bf16.mxu0 0
  %1146 = vmatpush1.bf16.msra.mxu0 0
  %1147 = vmatprep.subr.bf16.mxu0 0
  %1148 = vmatpush1.bf16.msra.mxu0 0
  %1149 = vmatprep.subr.bf16.mxu0 0
  %1150 = vmatpush1.bf16.msra.mxu0 0
  %1151 = vmatprep.subr.bf16.mxu0 0
  %1152 = vmatpush1.bf16.msra.mxu0 0
  %1153 = vmatprep.subr.bf16.mxu0 0
  %1154 = vmatpush1.bf16.msra.mxu0 0
  %1155 = vmatprep.subr.bf16.mxu0 0
  %1156 = vmatpush1.bf16.msra.mxu0 0
  %1157 = vmatprep.subr.bf16.mxu0 0
  %1158 = vmatpush1.bf16.msra.mxu0 %v590
  %1159 = vmatprep.subr.bf16.mxu0 0
  %1160 = vmatpush1.bf16.msra.mxu0 %v589
  %1161 = vmatprep.subr.bf16.mxu0 0
  %1162 = vmatpush2.bf16.msra.mxu0 0
  %1163 = vmatprep.subr.bf16.mxu0 0
  %1164 = vmatpush2.bf16.msra.mxu0 0
  %1165 = vmatprep.subr.bf16.mxu0 0
  %1166 = vmatpush2.bf16.msra.mxu0 0
  %1167 = vmatprep.subr.bf16.mxu0 0
  %1168 = vmatpush2.bf16.msra.mxu0 0
  %1169 = vmatprep.subr.bf16.mxu0 0
  %1170 = vmatpush2.bf16.msra.mxu0 0
  %1171 = vmatprep.subr.bf16.mxu0 0
  %1172 = vmatpush2.bf16.msra.mxu0 0
  %1173 = vmatprep.subr.bf16.mxu0 0
  %1174 = vmatpush2.bf16.msra.mxu0 0
  %1175 = vmatprep.subr.bf16.mxu0 0
  %1176 = vmatpush2.bf16.msra.mxu0 0
  %1177 = vmatprep.mubr.bf16.mxu0 0
  %1178 = vmatmul.mubr.bf16.gmra.mxu0 %v1143
  %v1179 = vpop.f32.mrf.mxu0
  %v1180 = vadd.f32 0.0, %v1179
  %v1181 = vpop.f32.mrf.mxu0
  %v1182 = vpop.f32.mrf.mxu0
  %v1183 = vpop.f32.mrf.mxu0
  %1184 = vdwg.mxu0
  %v1185 = vadd.f32 %v1139, %v1180
  %v1186 = vmul.f32 %v1185, 0.5
  %v1187 = vtanh.pop %v1186
  %v1188 = vmul.f32 %v1187, 0.5
  %v1189 = vadd.f32 %v1188, 0.5
  %v1190 = vtanh.pop %v1185
  %v1191 = vmul.f32 %v1189, %v1123
  %1193 = vrot.lane.b32.xlu0 %v1190, 64
  %v1194 = vpop.permute.xlu0 %1193
  %v1196 = vmul.f32 %v1189, %v1194
  %1198 = vrot.lane.b32.xlu0 %v1196, 32
  %v1199 = vpop.permute.xlu0 %1198
  %v1201 = vadd.f32 %v1191, %v1199
  %v1202 = vtanh.pop %v1201
  %1204 = vrot.lane.b32.xlu0 %v1202, 64
  %v1205 = vpop.permute.xlu0 %1204
  %v1207 = vmul.f32 %v1189, %v1205
  %v1208 = vpack.c.bf16 %v1207, %v1207
  %v1210 = vunpack.c.l.b16 %v1208
  %v1211 = vpack.c.b16 %v1210, %v1210
  %v1212 = vrot.slane %v1211, 5
  %1213 = vrot.lane.b32.xlu0 %v1212, 32
  %v1214 = vpop.permute.xlu0 %1213
  %1216 = vst.msk [vmem:[#allocation3 + $0x4] sm:$0x8] %vm904, %v1214
  %v1217 = vld [vmem:[#allocation3] sm:$0xf]
  %v1218 = vld [vmem:[#allocation3 + $0x4] sm:$0xf]
  %v1219 = vld [vmem:[%s4] sm:$0xf]
  %v1220 = vld [vmem:[%s4 + $0x4] sm:$0xf]
  %v1221 = vld [vmem:[%s4 + $0x8] sm:$0xf]
  %v1222 = vld [vmem:[%s4 + $0xc] sm:$0xf]
  %v1223 = vld [vmem:[%s5] sm:$0x1]
  %v1225 = vlaneseq
  %v1226 = vshrl.u32 %v1225, 7
  %v1227 = vsub.s32 0, %v1226
  %v1228 = vrot.slane %v1223, %v1227
  %v1232 = vunpack.c.l.b16 %v1217
  %v1233 = vunpack.c.l.b16 %v1218
  %v1234 = vpack.c.b16 %v1233, %v1232
  %v1239 = vunpack.c.l.b16 %v1219
  %v1240 = vunpack.c.l.b16 %v1220
  %v1241 = vunpack.c.l.b16 %v1221
  %v1242 = vunpack.c.l.b16 %v1222
  %v1243 = vpack.c.b16 %v1240, %v1239
  %v1244 = vpack.c.b16 %v1242, %v1241
  %v1248 = vsel %vm593, %v1234, 0
  %1250 = vmatprep.subr.bf16.mxu0 0
  %1251 = vmatpush1.bf16.msra.mxu0 0
  %1252 = vmatprep.subr.bf16.mxu0 0
  %1253 = vmatpush1.bf16.msra.mxu0 0
  %1254 = vmatprep.subr.bf16.mxu0 0
  %1255 = vmatpush1.bf16.msra.mxu0 0
  %1256 = vmatprep.subr.bf16.mxu0 0
  %1257 = vmatpush1.bf16.msra.mxu0 0
  %1258 = vmatprep.subr.bf16.mxu0 0
  %1259 = vmatpush1.bf16.msra.mxu0 0
  %1260 = vmatprep.subr.bf16.mxu0 0
  %1261 = vmatpush1.bf16.msra.mxu0 0
  %1262 = vmatprep.subr.bf16.mxu0 0
  %1263 = vmatpush1.bf16.msra.mxu0 %v1244
  %1264 = vmatprep.subr.bf16.mxu0 0
  %1265 = vmatpush1.bf16.msra.mxu0 %v1243
  %1266 = vmatprep.subr.bf16.mxu0 0
  %1267 = vmatpush2.bf16.msra.mxu0 0
  %1268 = vmatprep.subr.bf16.mxu0 0
  %1269 = vmatpush2.bf16.msra.mxu0 0
  %1270 = vmatprep.subr.bf16.mxu0 0
  %1271 = vmatpush2.bf16.msra.mxu0 0
  %1272 = vmatprep.subr.bf16.mxu0 0
  %1273 = vmatpush2.bf16.msra.mxu0 0
  %1274 = vmatprep.subr.bf16.mxu0 0
  %1275 = vmatpush2.bf16.msra.mxu0 0
  %1276 = vmatprep.subr.bf16.mxu0 0
  %1277 = vmatpush2.bf16.msra.mxu0 0
  %1278 = vmatprep.subr.bf16.mxu0 0
  %1279 = vmatpush2.bf16.msra.mxu0 0
  %1280 = vmatprep.subr.bf16.mxu0 0
  %1281 = vmatpush2.bf16.msra.mxu0 0
  %1282 = vmatprep.mubr.bf16.mxu0 0
  %1283 = vmatmul.mubr.bf16.gmra.mxu0 %v1248
  %v1284 = vpop.f32.mrf.mxu0
  %v1285 = vadd.f32 %v1228, %v1284
  %v1286 = vpop.f32.mrf.mxu0
  %v1287 = vpop.f32.mrf.mxu0
  %v1288 = vadd.f32 %v1228, %v1287
  %v1289 = vpop.f32.mrf.mxu0
  %1290 = vdwg.mxu0
  %vm1291 = vcmask 64512
  %v1292 = vsel %vm1291, %v1285, -inf
  %1293 = vmax.xlane.f32.xlu0 %v1292
  %v1294 = vpop.xlane.xlu0 %1293
  %v1295 = vsel %vm1291, %v1288, -inf
  %1296 = vmax.xlane.f32.xlu0 %v1295
  %v1297 = vpop.xlane.xlu0 %1296
  %v1298 = vlaneseq
  %v1299 = vand.u32 %v1298, 127
  %vm1300 = vcmp.eq.f32.partialorder %v1285, %v1294
  %vm1301 = vcmp.eq.f32.partialorder %v1288, %v1297
  %v1302 = vsel %vm1300, %v1299, 8
  %v1303 = vsel %vm1301, %v1299, 8
  %v1304 = vsel %vm1291, %v1302, 2147483647
  %v1305 = vand.u32 %v1304, 65535
  %v1306 = vshra.s32 %v1304, 16
  %v1307 = vcvt.s32.f32 %v1305
  %v1308 = vcvt.s32.f32 %v1306
  %1309 = vmin.xlane.f32.xlu0 %v1308
  %v1310 = vpop.xlane.xlu0 %1309
  %vm1311 = vcmp.eq.f32.partialorder %v1308, %v1310
  %v1312 = vsel %vm1311, %v1307, inf
  %1313 = vmin.xlane.f32.xlu0 %v1312
  %v1314 = vpop.xlane.xlu0 %1313
  %v1315 = vcvt.f32.s32 %v1314
  %v1316 = vcvt.f32.s32 %v1310
  %v1317 = vshll.u32 %v1316, 16
  %v1318 = vadd.s32 %v1317, %v1315
  %v1319 = vsel %vm1291, %v1303, 2147483647
  %v1320 = vand.u32 %v1319, 65535
  %v1321 = vshra.s32 %v1319, 16
  %v1322 = vcvt.s32.f32 %v1320
  %v1323 = vcvt.s32.f32 %v1321
  %1324 = vmin.xlane.f32.xlu0 %v1323
  %v1325 = vpop.xlane.xlu0 %1324
  %vm1326 = vcmp.eq.f32.partialorder %v1323, %v1325
  %v1327 = vsel %vm1326, %v1322, inf
  %1328 = vmin.xlane.f32.xlu0 %v1327
  %v1329 = vpop.xlane.xlu0 %1328
  %v1330 = vcvt.f32.s32 %v1329
  %v1331 = vcvt.f32.s32 %v1325
  %v1332 = vshll.u32 %v1331, 16
  %v1333 = vadd.s32 %v1332, %v1330
  %vm1334 = vcmp.lt.s32.totalorder %v1318, 7
  %v1335 = vsel %vm1334, %v1318, 7
  %vm1336 = vcmp.lt.s32.totalorder %v1333, 7
  %v1337 = vsel %vm1336, %v1333, 7
  %vm1338 = vcmask 7168
  %1339 = vst.msk [vmem:[%s6] sm:$0xff] %vm1338, %v1335
  %1340 = vst.msk [vmem:[%s6 + $0x8] sm:$0xff] %vm1338, %v1337
  // Predicated region
  $region26: #{bert_lstm_ner_forward.1} parent=0 // pred_check
    _
  $region27: #{bert_lstm_ner_forward.1} parent=0 // pred_check_branch
    %1342 = sbr.rel (0) target = $region29
  $region28: #{bert_lstm_ner_forward.1} parent=0 // pred_region
    _
  $region29: #{bert_lstm_ner_forward.1} parent=0 // pred_fallthru
    _
  // Predicated region
  $region30: #{bert_lstm_ner_forward.1} parent=0 // pred_check
    _
  $region31: #{bert_lstm_ner_forward.1} parent=0 // pred_check_branch
    %1344 = sbr.rel (0) target = $region33
  $region32: #{bert_lstm_ner_forward.1} parent=0 // pred_region
    _
  $region33: #{bert_lstm_ner_forward.1} parent=0 // pred_fallthru
    _

</llo_original>
